<compile_context>
chip_gen: v7x
topology: tpu7x:2x2x1
jax: 0.10.0
libtpu: 0.0.40
codegen_flags: <defaults>
</compile_context>

<pallas_src>
import functools

import jax
import jax.numpy as jnp
from jax.experimental import pallas as pl
from jax.experimental.pallas import tpu as pltpu


# --------------------------------------------------------------------------
# fused kernel: one (batch-tile, w1-chunk) grid point per invocation
# --------------------------------------------------------------------------
def prediction_kernel(x_ref, wc_ref, bc_ref, w1_ref, b1_ref, lng_ref, lnb_ref,
                      w2_ref, b2_ref, o_ref, pooled_ref, zacc_ref, *,
                      tb, tp, conv_len, pool_len, half_l, ln_eps):
    p_idx = pl.program_id(1)
    c_out = wc_ref.shape[2]

    # ---- stage 1 (first w1 chunk only): Conv1d(k=3, BN folded) + ELU + MaxPool ----
    @pl.when(p_idx == 0)
    def _():
        x2d = x_ref[0]                                     # (L*tb, c_in) bf16, time-major
        rows = conv_len * tb
        h = None
        for k in range(3):                                 # 3 taps, each one big matmul
            xk = x2d[k * tb:(k + conv_len) * tb, :]        # TB-aligned static slice
            yk = jnp.dot(xk, wc_ref[k], preferred_element_type=jnp.float32)
            h = yk if h is None else h + yk
        h = h + bc_ref[...]                                # (rows, c_out) f32, BN folded in

        # ELU (alpha=1), f32
        a = jnp.where(h > 0.0, h, jnp.exp(jnp.minimum(h, 0.0)) - 1.0)

        # MaxPool1d(2): pair consecutive time slabs (each slab = tb sublane rows)
        a3 = a.reshape(pool_len, 2 * tb, c_out)            # split leading dim (aligned)
        pooled = jnp.maximum(a3[:, :tb, :], a3[:, tb:, :]) # (pool_len, tb, c_out)

        pooled_ref[0:pool_len] = pooled.astype(pooled_ref.dtype)
        # padding row(s) (PyTorch MaxPool1d drops the trailing element); the matching
        # w1 rows are zero-padded host-side, so these contribute exactly 0.
        pooled_ref[pool_len:half_l] = jnp.zeros(
            (half_l - pool_len, tb, c_out), pooled_ref.dtype)
        zacc_ref[...] = jnp.zeros_like(zacc_ref)

    # ---- stage 2 (every chunk): streamed linear_first contraction -----------------
    # one batched dot_general: (tp, tb, c_out) x (tp, c_out, latent) -> (tp, tb, latent)
    start = pl.multiple_of(p_idx * tp, tp)
    chunk = pooled_ref[pl.ds(start, tp)]                   # (tp, tb, c_out) bf16
    partial = jax.lax.dot_general(
        chunk, w1_ref[...],
        dimension_numbers=(((2,), (1,)), ((0,), (0,))),
        preferred_element_type=jnp.float32)                # (tp, tb, latent) f32
    zacc_ref[...] += jnp.sum(partial, axis=0)              # cheap slab reduce

    # ---- stage 3 (last chunk): LayerNorm -> ELU -> Linear -> Sigmoid --------------
    @pl.when(p_idx == pl.num_programs(1) - 1)
    def _():
        z = zacc_ref[...] + b1_ref[...]                    # (tb, latent) f32
        mu = jnp.mean(z, axis=-1, keepdims=True)
        var = jnp.mean(jnp.square(z - mu), axis=-1, keepdims=True)
        zn = (z - mu) * jax.lax.rsqrt(var + ln_eps) * lng_ref[...] + lnb_ref[...]
        # Dropout(p=0.2) is identity in eval mode; ELU
        e = jnp.where(zn > 0.0, zn, jnp.exp(jnp.minimum(zn, 0.0)) - 1.0)
        logits = jnp.dot(e.astype(jnp.bfloat16), w2_ref[...],
                         preferred_element_type=jnp.float32) + b2_ref[...]
        # sigmoid with the divide on the EUP slot
        o_ref[...] = pl.reciprocal(1.0 + jnp.exp(-logits), approx=True)


def _nbytes(shape, dtype):
    n = 1
    for s in shape:
        n *= int(s)
    return n * jnp.dtype(dtype).itemsize


# --------------------------------------------------------------------------
# wrapper: host-side layout plumbing + BatchNorm fold + single pallas_call
# --------------------------------------------------------------------------
def prediction_forward(x, params, *, tb=8, tp=None, bn_eps=1e-5, ln_eps=1e-5):
    B, L, c_in = x.shape
    c_out = params["wc"].shape[2]
    assert L % 2 == 0, "MaxPool1d(2) path assumes an even conv length (L even)"
    conv_len = L - 2
    half_l = L // 2
    pool_len = conv_len // 2
    latent = params["w1"].shape[2]
    n_cells = params["w2"].shape[1]
    assert params["w1"].shape[:2] == (pool_len, c_out)
    assert tb % 8 == 0 and B % tb == 0, "tb must be a multiple of 8 dividing B"
    if tp is None:
        tp = next(d for d in (64, 32, 16, 8, 4, 2, 1) if half_l % d == 0)
    assert half_l % tp == 0
    bt_grid = B // tb
    pt_grid = half_l // tp

    # fold eval-mode BatchNorm1d into the conv weight/bias (exact, host-side)
    scale = params["bn_g"] * jax.lax.rsqrt(params["bn_rv"] + bn_eps)          # (1, c_out)
    wc = (params["wc"] * scale).astype(jnp.bfloat16)                          # (3, c_in, c_out)
    bc = (params["bc"] - params["bn_rm"]) * scale + params["bn_b"]            # (1, c_out) f32
    # zero-pad w1 to half_l rows so the (dropped) pool remainder contributes 0
    w1_pad = jnp.concatenate(
        [params["w1"], jnp.zeros((half_l - pool_len, c_out, latent), params["w1"].dtype)],
        axis=0).astype(jnp.bfloat16)                                          # (half_l, c_out, latent)
    w2 = params["w2"].astype(jnp.bfloat16)                                    # (latent, n_cells)

    # time-major batch tiles: x_tiles[bt, t*tb + b, :] = x[bt*tb + b, t, :]  (bf16 once)
    x_tiles = (x.reshape(bt_grid, tb, L, c_in)
                 .transpose(0, 2, 1, 3)
                 .reshape(bt_grid, L * tb, c_in)
                 .astype(jnp.bfloat16))

    # scoped-VMEM limit from actual block/scratch sizes (+ headroom)
    block_bytes = (
        _nbytes((1, L * tb, c_in), jnp.bfloat16)
        + _nbytes((3, c_in, c_out), jnp.bfloat16)
        + _nbytes((1, c_out), jnp.float32)
        + _nbytes((tp, c_out, latent), jnp.bfloat16)
        + 3 * _nbytes((1, latent), jnp.float32)
        + _nbytes((latent, n_cells), jnp.bfloat16)
        + _nbytes((1, n_cells), jnp.float32)
        + _nbytes((tb, n_cells), jnp.float32))
    scratch_bytes = (_nbytes((half_l, tb, c_out), jnp.bfloat16)
                     + _nbytes((tb, latent), jnp.float32))
    temp_bytes = 4 * _nbytes((conv_len * tb, c_out), jnp.float32)   # conv/ELU temporaries
    vmem_limit = int(min(max(2 * block_bytes + scratch_bytes + temp_bytes + (8 << 20),
                             32 << 20), 100 << 20))

    kernel = functools.partial(prediction_kernel, tb=tb, tp=tp, conv_len=conv_len,
                               pool_len=pool_len, half_l=half_l, ln_eps=ln_eps)

    out = pl.pallas_call(
        kernel,
        out_shape=jax.ShapeDtypeStruct((B, n_cells), jnp.float32),
        grid=(bt_grid, pt_grid),
        in_specs=[
            pl.BlockSpec((1, L * tb, c_in), lambda b, p: (b, 0, 0)),      # x (time-major tile)
            pl.BlockSpec((3, c_in, c_out), lambda b, p: (0, 0, 0)),       # conv w (BN-folded)
            pl.BlockSpec((1, c_out), lambda b, p: (0, 0)),                # conv b (BN-folded)
            pl.BlockSpec((tp, c_out, latent), lambda b, p: (p, 0, 0)),    # w1 chunk (streamed)
            pl.BlockSpec((1, latent), lambda b, p: (0, 0)),               # linear_first bias
            pl.BlockSpec((1, latent), lambda b, p: (0, 0)),               # LayerNorm gamma
            pl.BlockSpec((1, latent), lambda b, p: (0, 0)),               # LayerNorm beta
            pl.BlockSpec((latent, n_cells), lambda b, p: (0, 0)),         # final linear w
            pl.BlockSpec((1, n_cells), lambda b, p: (0, 0)),              # final linear b
        ],
        out_specs=pl.BlockSpec((tb, n_cells), lambda b, p: (b, 0)),
        scratch_shapes=[
            pltpu.VMEM((half_l, tb, c_out), jnp.bfloat16),                # cached pooled activations
            pltpu.VMEM((tb, latent), jnp.float32),                        # linear_first accumulator
        ],
        compiler_params=pltpu.CompilerParams(
            dimension_semantics=("parallel", "arbitrary"),
            vmem_limit_bytes=vmem_limit),
    )(x_tiles, wc, bc, w1_pad, params["b1"], params["ln_g"], params["ln_b"],
      w2, params["b2"])
    return out


# --------------------------------------------------------------------------
# parameters (random, in kernel-friendly layouts; torch mapping in comments)
# --------------------------------------------------------------------------
def init_params(key, d_models, seq_len, latent_dim, n_cells):
    c_in = d_models
    c_out = d_models // 2
    pool_len = (seq_len - 2) // 2
    ks = jax.random.split(key, 12)

    def nrm(k, shape, scale=0.05):
        return scale * jax.random.normal(k, shape, jnp.float32)

    return {
        # Conv1d: from torch, wc[k, ci, co] = conv.weight[co, ci, k]
        "wc": nrm(ks[0], (3, c_in, c_out)),
        "bc": nrm(ks[1], (1, c_out)),
        # BatchNorm1d eval-mode affine + running statistics
        "bn_g": 1.0 + nrm(ks[2], (1, c_out), 0.1),
        "bn_b": nrm(ks[3], (1, c_out), 0.1),
        "bn_rm": nrm(ks[4], (1, c_out), 0.1),
        "bn_rv": 1.0 + 0.1 * jnp.abs(jax.random.normal(ks[5], (1, c_out), jnp.float32)),
        # linear_first in time-major-blocked layout; from torch:
        #   w1 = linear_first.weight.T.reshape(c_out, pool_len, latent).transpose(1, 0, 2)
        "w1": nrm(ks[6], (pool_len, c_out, latent_dim)),
        "b1": nrm(ks[7], (1, latent_dim)),
        # LayerNorm(latent_dim)
        "ln_g": 1.0 + nrm(ks[8], (1, latent_dim), 0.1),
        "ln_b": nrm(ks[9], (1, latent_dim), 0.1),
        # final Linear: w2 = linear.weight.T
        "w2": nrm(ks[10], (latent_dim, n_cells)),
        "b2": nrm(ks[11], (1, n_cells)),
    }


# --------------------------------------------------------------------------
# pure-JAX reference (same math, unfolded BatchNorm) for a sanity check
# --------------------------------------------------------------------------
def reference_forward(x, params, *, bn_eps=1e-5, ln_eps=1e-5):
    B, L, _ = x.shape
    conv_len = L - 2
    pool_len = conv_len // 2
    c_out = params["wc"].shape[2]
    latent = params["w1"].shape[2]

    h = params["bc"][None] + sum(
        jnp.einsum("blc,cd->bld", x[:, k:k + conv_len, :], params["wc"][k])
        for k in range(3))
    h = ((h - params["bn_rm"][None]) * jax.lax.rsqrt(params["bn_rv"][None] + bn_eps)
         * params["bn_g"][None] + params["bn_b"][None])
    a = jnp.where(h > 0.0, h, jnp.exp(jnp.minimum(h, 0.0)) - 1.0)
    pooled = jnp.maximum(a[:, 0:conv_len:2, :], a[:, 1:conv_len:2, :])  # (B, P, C_out)
    flat = pooled.reshape(B, pool_len * c_out)
    z = flat @ params["w1"].reshape(pool_len * c_out, latent) + params["b1"]
    mu = z.mean(-1, keepdims=True)
    var = ((z - mu) ** 2).mean(-1, keepdims=True)
    zn = (z - mu) * jax.lax.rsqrt(var + ln_eps) * params["ln_g"] + params["ln_b"]
    e = jnp.where(zn > 0.0, zn, jnp.exp(jnp.minimum(zn, 0.0)) - 1.0)
    logits = e @ params["w2"] + params["b2"]
    return 1.0 / (1.0 + jnp.exp(-logits))


if __name__ == "__main__":
    # small shapes consistent with the module (real: L=512, d_models=768,
    # n_cells=2034; in_features = (d_models//2) * ((L-2)//2)).
    B, L, d_models = 16, 32, 32
    latent_dim, n_cells = 32, 256

    key = jax.random.PRNGKey(0)
    kp, kx = jax.random.split(key)
    params = init_params(kp, d_models, L, latent_dim, n_cells)
    x = jax.random.normal(kx, (B, L, d_models), jnp.float32)

    fwd = jax.jit(functools.partial(prediction_forward, tb=8, tp=8))
    out = jax.block_until_ready(fwd(x, params))
    assert out.shape == (B, n_cells)
    assert bool(jnp.all(jnp.isfinite(out)))

    ref = reference_forward(x, params)
    max_err = float(jnp.max(jnp.abs(out - ref)))
    assert max_err < 5e-2, f"mismatch vs pure-JAX reference: {max_err}"
    print("KERNEL_OK")
</pallas_src>

<mosaic_0001>
module attributes {stable_mosaic.version = 11 : i64} {
  func.func @prediction_kernel(%arg0: i32, %arg1: i32, %arg2: memref<1x256x32xbf16, #tpu.memory_space<vmem>>, %arg3: memref<3x32x16xbf16, #tpu.memory_space<vmem>>, %arg4: memref<1x16xf32, #tpu.memory_space<vmem>>, %arg5: memref<8x16x32xbf16, #tpu.memory_space<vmem>>, %arg6: memref<1x32xf32, #tpu.memory_space<vmem>>, %arg7: memref<1x32xf32, #tpu.memory_space<vmem>>, %arg8: memref<1x32xf32, #tpu.memory_space<vmem>>, %arg9: memref<32x256xbf16, #tpu.memory_space<vmem>>, %arg10: memref<1x256xf32, #tpu.memory_space<vmem>>, %arg11: memref<8x256xf32, #tpu.memory_space<vmem>>, %arg12: memref<16x8x16xbf16, #tpu.memory_space<vmem>>, %arg13: memref<8x32xf32, #tpu.memory_space<vmem>>) attributes {dimension_semantics = [#tpu.dimension_semantics<parallel>, #tpu.dimension_semantics<arbitrary>], iteration_bounds = array<i64: 2, 2>, scalar_prefetch = 0 : i64, scratch_operands = 2 : i64, tpu.core_type = #tpu.core_type<tc>, window_params = [{transform_indices = @transform_0, window_bounds = array<i64: 1, 256, 32>}, {pipeline_mode = #tpu.pipeline_mode<synchronous>, transform_indices = @transform_1, window_bounds = array<i64: 3, 32, 16>}, {pipeline_mode = #tpu.pipeline_mode<synchronous>, transform_indices = @transform_2, window_bounds = array<i64: 1, 16>}, {transform_indices = @transform_3, window_bounds = array<i64: 8, 16, 32>}, {pipeline_mode = #tpu.pipeline_mode<synchronous>, transform_indices = @transform_4, window_bounds = array<i64: 1, 32>}, {pipeline_mode = #tpu.pipeline_mode<synchronous>, transform_indices = @transform_5, window_bounds = array<i64: 1, 32>}, {pipeline_mode = #tpu.pipeline_mode<synchronous>, transform_indices = @transform_6, window_bounds = array<i64: 1, 32>}, {pipeline_mode = #tpu.pipeline_mode<synchronous>, transform_indices = @transform_7, window_bounds = array<i64: 32, 256>}, {pipeline_mode = #tpu.pipeline_mode<synchronous>, transform_indices = @transform_8, window_bounds = array<i64: 1, 256>}, {transform_indices = @transform_9, window_bounds = array<i64: 8, 256>}]} {
    %c0_i32 = arith.constant 0 : i32
    %0 = arith.cmpi eq, %arg1, %c0_i32 : i32
    %1 = arith.extui %0 : i1 to i32
    %c0_i32_0 = arith.constant 0 : i32
    %2 = arith.cmpi ne, %1, %c0_i32_0 : i32
    scf.if %2 {
      %c0_11 = arith.constant 0 : index
      %c0_12 = arith.constant 0 : index
      %c0_13 = arith.constant 0 : index
      %16 = vector.load %arg2[%c0_11, %c0_12, %c0_13] : memref<1x256x32xbf16, #tpu.memory_space<vmem>>, vector<1x256x32xbf16>
      %17 = vector.shape_cast %16 : vector<1x256x32xbf16> to vector<256x32xbf16>
      %18 = vector.extract_strided_slice %17 {offsets = [0, 0], sizes = [240, 32], strides = [1, 1]} : vector<256x32xbf16> to vector<240x32xbf16>
      %c0_14 = arith.constant 0 : index
      %c0_15 = arith.constant 0 : index
      %c0_16 = arith.constant 0 : index
      %19 = vector.load %arg3[%c0_14, %c0_15, %c0_16] : memref<3x32x16xbf16, #tpu.memory_space<vmem>>, vector<1x32x16xbf16>
      %20 = vector.shape_cast %19 : vector<1x32x16xbf16> to vector<32x16xbf16>
      %cst_17 = arith.constant dense<0.000000e+00> : vector<240x16xf32>
      %21 = tpu.matmul %18, %20, %cst_17 {dimension_numbers = #tpu.dot_dimension_numbers<[1], [0], [0], [1], [0, 0, 1, 1], [], []>} : vector<240x32xbf16>, vector<32x16xbf16>, vector<240x16xf32> -> vector<240x16xf32>
      %22 = vector.extract_strided_slice %17 {offsets = [8, 0], sizes = [240, 32], strides = [1, 1]} : vector<256x32xbf16> to vector<240x32xbf16>
      %c1 = arith.constant 1 : index
      %c0_18 = arith.constant 0 : index
      %c0_19 = arith.constant 0 : index
      %23 = vector.load %arg3[%c1, %c0_18, %c0_19] : memref<3x32x16xbf16, #tpu.memory_space<vmem>>, vector<1x32x16xbf16>
      %24 = vector.shape_cast %23 : vector<1x32x16xbf16> to vector<32x16xbf16>
      %cst_20 = arith.constant dense<0.000000e+00> : vector<240x16xf32>
      %25 = tpu.matmul %22, %24, %cst_20 {dimension_numbers = #tpu.dot_dimension_numbers<[1], [0], [0], [1], [0, 0, 1, 1], [], []>} : vector<240x32xbf16>, vector<32x16xbf16>, vector<240x16xf32> -> vector<240x16xf32>
      %26 = arith.addf %21, %25 : vector<240x16xf32>
      %27 = vector.extract_strided_slice %17 {offsets = [16, 0], sizes = [240, 32], strides = [1, 1]} : vector<256x32xbf16> to vector<240x32xbf16>
      %c2 = arith.constant 2 : index
      %c0_21 = arith.constant 0 : index
      %c0_22 = arith.constant 0 : index
      %28 = vector.load %arg3[%c2, %c0_21, %c0_22] : memref<3x32x16xbf16, #tpu.memory_space<vmem>>, vector<1x32x16xbf16>
      %29 = vector.shape_cast %28 : vector<1x32x16xbf16> to vector<32x16xbf16>
      %cst_23 = arith.constant dense<0.000000e+00> : vector<240x16xf32>
      %30 = tpu.matmul %27, %29, %cst_23 {dimension_numbers = #tpu.dot_dimension_numbers<[1], [0], [0], [1], [0, 0, 1, 1], [], []>} : vector<240x32xbf16>, vector<32x16xbf16>, vector<240x16xf32> -> vector<240x16xf32>
      %31 = arith.addf %26, %30 : vector<240x16xf32>
      %c0_24 = arith.constant 0 : index
      %c0_25 = arith.constant 0 : index
      %32 = vector.load %arg4[%c0_24, %c0_25] : memref<1x16xf32, #tpu.memory_space<vmem>>, vector<1x16xf32>
      %33 = vector.broadcast %32 : vector<1x16xf32> to vector<240x16xf32>
      %34 = arith.addf %31, %33 : vector<240x16xf32>
      %cst_26 = arith.constant 0.000000e+00 : f32
      %35 = vector.broadcast %cst_26 : f32 to vector<240x16xf32>
      %36 = arith.cmpf ogt, %34, %35 : vector<240x16xf32>
      %cst_27 = arith.constant 0.000000e+00 : f32
      %37 = vector.broadcast %cst_27 : f32 to vector<240x16xf32>
      %38 = arith.minimumf %34, %37 : vector<240x16xf32>
      %39 = math.exp %38 : vector<240x16xf32>
      %cst_28 = arith.constant 1.000000e+00 : f32
      %40 = vector.broadcast %cst_28 : f32 to vector<240x16xf32>
      %41 = arith.subf %39, %40 : vector<240x16xf32>
      %42 = arith.select %36, %34, %41 : vector<240x16xi1>, vector<240x16xf32>
      %43 = vector.shape_cast %42 : vector<240x16xf32> to vector<15x16x16xf32>
      %44 = vector.extract_strided_slice %43 {offsets = [0, 0, 0], sizes = [15, 8, 16], strides = [1, 1, 1]} : vector<15x16x16xf32> to vector<15x8x16xf32>
      %45 = vector.extract_strided_slice %43 {offsets = [0, 8, 0], sizes = [15, 8, 16], strides = [1, 1, 1]} : vector<15x16x16xf32> to vector<15x8x16xf32>
      %46 = arith.maximumf %44, %45 : vector<15x8x16xf32>
      %47 = arith.truncf %46 : vector<15x8x16xf32> to vector<15x8x16xbf16>
      %c0_29 = arith.constant 0 : index
      %c0_30 = arith.constant 0 : index
      %c0_31 = arith.constant 0 : index
      %48 = vector.load %arg12[%c0_29, %c0_30, %c0_31] : memref<16x8x16xbf16, #tpu.memory_space<vmem>>, vector<15x8x16xbf16>
      tpu.vector_store %arg12[%c0_29, %c0_30, %c0_31], %47 {strides = array<i32>} : memref<16x8x16xbf16, #tpu.memory_space<vmem>>, vector<15x8x16xbf16>,
      %cst_32 = arith.constant 0.000000e+00 : bf16
      %49 = vector.broadcast %cst_32 : bf16 to vector<1x8x16xbf16>
      %c15 = arith.constant 15 : index
      %c0_33 = arith.constant 0 : index
      %c0_34 = arith.constant 0 : index
      %50 = vector.load %arg12[%c15, %c0_33, %c0_34] : memref<16x8x16xbf16, #tpu.memory_space<vmem>>, vector<1x8x16xbf16>
      tpu.vector_store %arg12[%c15, %c0_33, %c0_34], %49 {strides = array<i32>} : memref<16x8x16xbf16, #tpu.memory_space<vmem>>, vector<1x8x16xbf16>,
      %cst_35 = arith.constant 0.000000e+00 : f32
      %51 = vector.broadcast %cst_35 : f32 to vector<8x32xf32>
      %c0_36 = arith.constant 0 : index
      %c0_37 = arith.constant 0 : index
      %52 = vector.load %arg13[%c0_36, %c0_37] : memref<8x32xf32, #tpu.memory_space<vmem>>, vector<8x32xf32>
      tpu.vector_store %arg13[%c0_36, %c0_37], %51 {strides = array<i32>} : memref<8x32xf32, #tpu.memory_space<vmem>>, vector<8x32xf32>,
    } else {
    }
    %c8_i32 = arith.constant 8 : i32
    %3 = arith.muli %arg1, %c8_i32 : i32
    %4 = tpu.assume_multiple %3, 8 : i32
    %5 = arith.index_cast %4 : i32 to index
    %c0 = arith.constant 0 : index
    %c0_1 = arith.constant 0 : index
    %6 = vector.load %arg12[%5, %c0, %c0_1] : memref<16x8x16xbf16, #tpu.memory_space<vmem>>, vector<8x8x16xbf16>
    %c0_2 = arith.constant 0 : index
    %c0_3 = arith.constant 0 : index
    %c0_4 = arith.constant 0 : index
    %7 = vector.load %arg5[%c0_2, %c0_3, %c0_4] : memref<8x16x32xbf16, #tpu.memory_space<vmem>>, vector<8x16x32xbf16>
    %cst = arith.constant dense<0.000000e+00> : vector<8x8x32xf32>
    %8 = tpu.matmul %6, %7, %cst {dimension_numbers = #tpu.dot_dimension_numbers<[2], [1], [1], [2], [0, 0, 0, 1, 1, 2], [0], [0]>} : vector<8x8x16xbf16>, vector<8x16x32xbf16>, vector<8x8x32xf32> -> vector<8x8x32xf32>
    %c0_5 = arith.constant 0 : index
    %c0_6 = arith.constant 0 : index
    %9 = vector.load %arg13[%c0_5, %c0_6] : memref<8x32xf32, #tpu.memory_space<vmem>>, vector<8x32xf32>
    %cst_7 = arith.constant dense<0.000000e+00> : vector<8x32xf32>
    %10 = vector.multi_reduction <add>, %8, %cst_7 [0] : vector<8x8x32xf32> to vector<8x32xf32>
    %11 = arith.addf %9, %10 : vector<8x32xf32>
    %c0_8 = arith.constant 0 : index
    %c0_9 = arith.constant 0 : index
    %12 = vector.load %arg13[%c0_8, %c0_9] : memref<8x32xf32, #tpu.memory_space<vmem>>, vector<8x32xf32>
    tpu.vector_store %arg13[%c0_8, %c0_9], %11 {strides = array<i32>} : memref<8x32xf32, #tpu.memory_space<vmem>>, vector<8x32xf32>,
    %c1_i32 = arith.constant 1 : i32
    %13 = arith.cmpi eq, %arg1, %c1_i32 : i32
    %14 = arith.extui %13 : i1 to i32
    %c0_i32_10 = arith.constant 0 : i32
    %15 = arith.cmpi ne, %14, %c0_i32_10 : i32
    scf.if %15 {
      %c0_11 = arith.constant 0 : index
      %c0_12 = arith.constant 0 : index
      %16 = vector.load %arg13[%c0_11, %c0_12] : memref<8x32xf32, #tpu.memory_space<vmem>>, vector<8x32xf32>
      %c0_13 = arith.constant 0 : index
      %c0_14 = arith.constant 0 : index
      %17 = vector.load %arg6[%c0_13, %c0_14] : memref<1x32xf32, #tpu.memory_space<vmem>>, vector<1x32xf32>
      %18 = vector.broadcast %17 : vector<1x32xf32> to vector<8x32xf32>
      %19 = arith.addf %16, %18 : vector<8x32xf32>
      %cst_15 = arith.constant dense<0.000000e+00> : vector<8xf32>
      %20 = vector.multi_reduction <add>, %19, %cst_15 [1] : vector<8x32xf32> to vector<8xf32>
      %21 = vector.shape_cast %20 : vector<8xf32> to vector<8x1xf32>
      %cst_16 = arith.constant 3.200000e+01 : f32
      %22 = vector.broadcast %cst_16 : f32 to vector<8x1xf32>
      %23 = arith.divf %21, %22 : vector<8x1xf32>
      %24 = vector.broadcast %23 : vector<8x1xf32> to vector<8x32xf32>
      %25 = arith.subf %19, %24 : vector<8x32xf32>
      %26 = arith.mulf %25, %25 : vector<8x32xf32>
      %cst_17 = arith.constant dense<0.000000e+00> : vector<8xf32>
      %27 = vector.multi_reduction <add>, %26, %cst_17 [1] : vector<8x32xf32> to vector<8xf32>
      %28 = vector.shape_cast %27 : vector<8xf32> to vector<8x1xf32>
      %cst_18 = arith.constant 3.200000e+01 : f32
      %29 = vector.broadcast %cst_18 : f32 to vector<8x1xf32>
      %30 = arith.divf %28, %29 : vector<8x1xf32>
      %31 = vector.broadcast %23 : vector<8x1xf32> to vector<8x32xf32>
      %32 = arith.subf %19, %31 : vector<8x32xf32>
      %cst_19 = arith.constant 9.99999974E-6 : f32
      %33 = vector.broadcast %cst_19 : f32 to vector<8x1xf32>
      %34 = arith.addf %30, %33 : vector<8x1xf32>
      %35 = math.rsqrt %34 : vector<8x1xf32>
      %36 = vector.broadcast %35 : vector<8x1xf32> to vector<8x32xf32>
      %37 = arith.mulf %32, %36 : vector<8x32xf32>
      %c0_20 = arith.constant 0 : index
      %c0_21 = arith.constant 0 : index
      %38 = vector.load %arg7[%c0_20, %c0_21] : memref<1x32xf32, #tpu.memory_space<vmem>>, vector<1x32xf32>
      %39 = vector.broadcast %38 : vector<1x32xf32> to vector<8x32xf32>
      %40 = arith.mulf %37, %39 : vector<8x32xf32>
      %c0_22 = arith.constant 0 : index
      %c0_23 = arith.constant 0 : index
      %41 = vector.load %arg8[%c0_22, %c0_23] : memref<1x32xf32, #tpu.memory_space<vmem>>, vector<1x32xf32>
      %42 = vector.broadcast %41 : vector<1x32xf32> to vector<8x32xf32>
      %43 = arith.addf %40, %42 : vector<8x32xf32>
      %cst_24 = arith.constant 0.000000e+00 : f32
      %44 = vector.broadcast %cst_24 : f32 to vector<8x32xf32>
      %45 = arith.cmpf ogt, %43, %44 : vector<8x32xf32>
      %cst_25 = arith.constant 0.000000e+00 : f32
      %46 = vector.broadcast %cst_25 : f32 to vector<8x32xf32>
      %47 = arith.minimumf %43, %46 : vector<8x32xf32>
      %48 = math.exp %47 : vector<8x32xf32>
      %cst_26 = arith.constant 1.000000e+00 : f32
      %49 = vector.broadcast %cst_26 : f32 to vector<8x32xf32>
      %50 = arith.subf %48, %49 : vector<8x32xf32>
      %51 = arith.select %45, %43, %50 : vector<8x32xi1>, vector<8x32xf32>
      %52 = arith.truncf %51 : vector<8x32xf32> to vector<8x32xbf16>
      %c0_27 = arith.constant 0 : index
      %c0_28 = arith.constant 0 : index
      %53 = vector.load %arg9[%c0_27, %c0_28] : memref<32x256xbf16, #tpu.memory_space<vmem>>, vector<32x256xbf16>
      %cst_29 = arith.constant dense<0.000000e+00> : vector<8x256xf32>
      %54 = tpu.matmul %52, %53, %cst_29 {dimension_numbers = #tpu.dot_dimension_numbers<[1], [0], [0], [1], [0, 0, 1, 1], [], []>} : vector<8x32xbf16>, vector<32x256xbf16>, vector<8x256xf32> -> vector<8x256xf32>
      %c0_30 = arith.constant 0 : index
      %c0_31 = arith.constant 0 : index
      %55 = vector.load %arg10[%c0_30, %c0_31] : memref<1x256xf32, #tpu.memory_space<vmem>>, vector<1x256xf32>
      %56 = vector.broadcast %55 : vector<1x256xf32> to vector<8x256xf32>
      %57 = arith.addf %54, %56 : vector<8x256xf32>
      %cst_32 = arith.constant 0.000000e+00 : f32
      %58 = vector.broadcast %cst_32 : f32 to vector<8x256xf32>
      %59 = arith.subf %58, %57 : vector<8x256xf32>
      %60 = math.exp %59 : vector<8x256xf32>
      %cst_33 = arith.constant 1.000000e+00 : f32
      %61 = vector.broadcast %cst_33 : f32 to vector<8x256xf32>
      %62 = arith.addf %61, %60 : vector<8x256xf32>
      %63 = tpu.reciprocal %62 {approx = true} : vector<8x256xf32> -> vector<8x256xf32>
      %c0_34 = arith.constant 0 : index
      %c0_35 = arith.constant 0 : index
      %64 = vector.load %arg11[%c0_34, %c0_35] : memref<8x256xf32, #tpu.memory_space<vmem>>, vector<8x256xf32>
      tpu.vector_store %arg11[%c0_34, %c0_35], %63 {strides = array<i32>} : memref<8x256xf32, #tpu.memory_space<vmem>>, vector<8x256xf32>,
    } else {
    }
    return
  }
  func.func @transform_0(%arg0: i32, %arg1: i32) -> (i32, i32, i32) {
    %c0_i32 = arith.constant 0 : i32
    %c0_i32_0 = arith.constant 0 : i32
    %c0_i32_1 = arith.constant 0 : i32
    return %arg0, %c0_i32, %c0_i32_0 : i32, i32, i32
  }
  func.func @transform_1(%arg0: i32, %arg1: i32) -> (i32, i32, i32) {
    %c0_i32 = arith.constant 0 : i32
    %c0_i32_0 = arith.constant 0 : i32
    %c0_i32_1 = arith.constant 0 : i32
    %c0_i32_2 = arith.constant 0 : i32
    return %c0_i32, %c0_i32_0, %c0_i32_1 : i32, i32, i32
  }
  func.func @transform_2(%arg0: i32, %arg1: i32) -> (i32, i32) {
    %c0_i32 = arith.constant 0 : i32
    %c0_i32_0 = arith.constant 0 : i32
    %c0_i32_1 = arith.constant 0 : i32
    return %c0_i32, %c0_i32_0 : i32, i32
  }
  func.func @transform_3(%arg0: i32, %arg1: i32) -> (i32, i32, i32) {
    %c0_i32 = arith.constant 0 : i32
    %c0_i32_0 = arith.constant 0 : i32
    %c0_i32_1 = arith.constant 0 : i32
    return %arg1, %c0_i32, %c0_i32_0 : i32, i32, i32
  }
  func.func @transform_4(%arg0: i32, %arg1: i32) -> (i32, i32) {
    %c0_i32 = arith.constant 0 : i32
    %c0_i32_0 = arith.constant 0 : i32
    %c0_i32_1 = arith.constant 0 : i32
    return %c0_i32, %c0_i32_0 : i32, i32
  }
  func.func @transform_5(%arg0: i32, %arg1: i32) -> (i32, i32) {
    %c0_i32 = arith.constant 0 : i32
    %c0_i32_0 = arith.constant 0 : i32
    %c0_i32_1 = arith.constant 0 : i32
    return %c0_i32, %c0_i32_0 : i32, i32
  }
  func.func @transform_6(%arg0: i32, %arg1: i32) -> (i32, i32) {
    %c0_i32 = arith.constant 0 : i32
    %c0_i32_0 = arith.constant 0 : i32
    %c0_i32_1 = arith.constant 0 : i32
    return %c0_i32, %c0_i32_0 : i32, i32
  }
  func.func @transform_7(%arg0: i32, %arg1: i32) -> (i32, i32) {
    %c0_i32 = arith.constant 0 : i32
    %c0_i32_0 = arith.constant 0 : i32
    %c0_i32_1 = arith.constant 0 : i32
    return %c0_i32, %c0_i32_0 : i32, i32
  }
  func.func @transform_8(%arg0: i32, %arg1: i32) -> (i32, i32) {
    %c0_i32 = arith.constant 0 : i32
    %c0_i32_0 = arith.constant 0 : i32
    %c0_i32_1 = arith.constant 0 : i32
    return %c0_i32, %c0_i32_0 : i32, i32
  }
  func.func @transform_9(%arg0: i32, %arg1: i32) -> (i32, i32) {
    %c0_i32 = arith.constant 0 : i32
    %c0_i32_0 = arith.constant 0 : i32
    return %arg0, %c0_i32 : i32, i32
  }
}

</mosaic_0001>

<llo_original>
// kernel: prediction_forward.1
$region0: #{prediction_forward.1}
  #allocation0 [shape = 'u32[]', space=smem, size = 0x4, offset = 0x4, fixed_abs, tag = 'smem constant byte address 0x4 - core index']
  #allocation1 [shape = 'u32[144,128]{1,0:T(1,128)}', space=vmem, size = 0x12000, scoped, tag = 'internal scratch']
  #allocation2 [shape = 'bf16[16,8,16]{2,1,0:T(8,128)(2,1)}', space=vmem, size = 0x8000, scoped, tag = 'scratch operand']
  #allocation3 [shape = 'f32[8,32]{1,0:T(8,128)}', space=vmem, size = 0x1000, scoped, tag = 'scratch operand']
  %s0 = inlined_call_operand.vmem [shape: bf16[2,256,32], index: 0, kind: input, shape index: {}]
  %s1 = inlined_call_operand.vmem [shape: bf16[3,32,16], index: 1, kind: input, shape index: {}]
  %s2 = inlined_call_operand.vmem [shape: f32[1,16], index: 2, kind: input, shape index: {}]
  %s3 = inlined_call_operand.vmem [shape: bf16[16,16,32], index: 3, kind: input, shape index: {}]
  %s4 = inlined_call_operand.vmem [shape: f32[1,32], index: 4, kind: input, shape index: {}]
  %s5 = inlined_call_operand.vmem [shape: f32[1,32], index: 5, kind: input, shape index: {}]
  %s6 = inlined_call_operand.vmem [shape: f32[1,32], index: 6, kind: input, shape index: {}]
  %s7 = inlined_call_operand.vmem [shape: bf16[32,256], index: 7, kind: input, shape index: {}]
  %s8 = inlined_call_operand.vmem [shape: f32[1,256], index: 8, kind: input, shape index: {}]
  %s9 = inlined_call_operand.hbm [shape: f32[16,256], index: 9, kind: output, shape index: {}]
  %s10 = sld [smem:[#allocation0]]
  $region77: #{prediction_forward.1} parent=0
    _
  %s12 = ssub.s32 1, %s10
  %s13 = scalar_select 0, %s12, %s10
  $region1: #{prediction_forward.1} parent=0
    #allocation4 [shape = 'u8[16384]{0}', space=vmem, size = 0x4000, scoped, tag = 'output window, operand 0']
    #allocation5 [shape = 's32[2]{0}', space=sflag, size = 0x8, scoped, tag = 'scoped memory for prediction_forward.1']
    %14 = vsyncpa [#allocation5], 0
    %s15 = scalar_lea.sflag [#allocation5], 1
    %16 = vsyncpa %s15, 0
    loop: start=0, step=1, limit=6
    $region2: #{prediction_forward.1} parent=1 // loop_pre_header
      _
    $region3: #{prediction_forward.1} parent=1 // loop_header
      %s18 = sphi 0, %s22
      %p19 = scmp.ge.s32.totalorder %s18, 6
      %s25 = sphi 0, %s37
      %s26 = sphi 0, %s33
      %s27 = sphi 0, %s25
      %s28 = sphi 0, %s26
      %s29 = sphi 0, %s27
      %s30 = sphi 0, %s28
      %s40 = sphi 0, %s42
      %s43 = sphi 0, %s40
      %s44 = sphi 0, %s43
      %s60 = sphi 0, %s44
      %s64 = sphi 0, %s64
      %s66 = sphi 0, %s64
      %s67 = sphi 0, %s66
      %s81 = sphi 0, %s67
      %s85 = sphi 0, %s85
      %s87 = sphi 0, %s85
      %s88 = sphi 0, %s87
      %s102 = sphi 0, %s88
      %s108 = sphi 0, %s110
      %s111 = sphi 0, %s108
      %s112 = sphi 0, %s111
      %s128 = sphi 0, %s112
      %s132 = sphi 0, %s132
      %s134 = sphi 0, %s132
      %s135 = sphi 0, %s134
      %s149 = sphi 0, %s135
      %s153 = sphi 0, %s153
      %s155 = sphi 0, %s153
      %s156 = sphi 0, %s155
      %s170 = sphi 0, %s156
      %s174 = sphi 0, %s174
      %s176 = sphi 0, %s174
      %s177 = sphi 0, %s176
      %s191 = sphi 0, %s177
      %s195 = sphi 0, %s195
      %s197 = sphi 0, %s195
      %s198 = sphi 0, %s197
      %s212 = sphi 0, %s198
      %s216 = sphi 0, %s216
      %s218 = sphi 0, %s216
      %s219 = sphi 0, %s218
      %s233 = sphi 0, %s219
      %s239 = sphi 0, %s241
      %s242 = sphi 0, %s239
      %s243 = sphi 0, %s242
      %s259 = sphi 0, %s243
    $region4: #{prediction_forward.1} parent=1 // loop_header_branch
      %21 = sbr.rel (%p19) target = $region8
    $region5: #{prediction_forward.1} parent=1 // loop_body
      %s23 = ssub.s32 %s18, 1
      %s24 = ssub.s32 %s18, 2
      %s31 = sadd.s32 1, %s26
      %p32 = scmp.ge.s32.totalorder %s31, 2
      %s33 = scalar_select %p32, 0, %s31
      %s34 = sadd.s32 1, %s25
      %s35 = scalar_select %p32, %s34, %s25
      %p36 = scmp.ge.s32.totalorder %s35, 2
      %s37 = scalar_select %p36, 0, %s35
      %s38 = ssub.s32 %s25, %s37
      %p39 = scmp.eq.s32.totalorder %s38, 0
      %s41 = sadd.s32 %s40, 1
      %s42 = scalar_select %p39, %s40, %s41
      %p45 = pneg %p39
      %p46 = scmp.eq.s32.totalorder %s18, 3
      %p47 = por %p45, %p46
      %p48 = scmp.ne.s32.totalorder %s40, %s43
      %p49 = scmp.eq.s32.totalorder %s18, 0
      %p50 = por %p48, %p49
      %p51 = scmp.ne.s32.totalorder %s40, %s43
      %p52 = scmp.eq.s32.totalorder %s23, 3
      %p53 = por %p51, %p52
      %p54 = scmp.ne.s32.totalorder %s43, %s44
      %p55 = scmp.eq.s32.totalorder %s23, 0
      %p56 = por %p54, %p55
      %p57 = scmp.ne.s32.totalorder %s43, %s44
      %p58 = scmp.eq.s32.totalorder %s24, 3
      %p59 = por %p57, %p58
      %p61 = scmp.ne.s32.totalorder %s44, %s60
      %p62 = scmp.eq.s32.totalorder %s24, 0
      %p63 = por %p61, %p62
      %s65 = sadd.s32 %s64, 1
      %p68 = scmp.eq.s32.totalorder %s18, 3
      %p69 = scmp.ne.s32.totalorder %s64, %s66
      %p70 = scmp.eq.s32.totalorder %s18, 0
      %p71 = por %p69, %p70
      %p72 = scmp.ne.s32.totalorder %s64, %s66
      %p73 = scmp.eq.s32.totalorder %s23, 3
      %p74 = por %p72, %p73
      %p75 = scmp.ne.s32.totalorder %s66, %s67
      %p76 = scmp.eq.s32.totalorder %s23, 0
      %p77 = por %p75, %p76
      %p78 = scmp.ne.s32.totalorder %s66, %s67
      %p79 = scmp.eq.s32.totalorder %s24, 3
      %p80 = por %p78, %p79
      %p82 = scmp.ne.s32.totalorder %s67, %s81
      %p83 = scmp.eq.s32.totalorder %s24, 0
      %p84 = por %p82, %p83
      %s86 = sadd.s32 %s85, 1
      %p89 = scmp.eq.s32.totalorder %s18, 3
      %p90 = scmp.ne.s32.totalorder %s85, %s87
      %p91 = scmp.eq.s32.totalorder %s18, 0
      %p92 = por %p90, %p91
      %p93 = scmp.ne.s32.totalorder %s85, %s87
      %p94 = scmp.eq.s32.totalorder %s23, 3
      %p95 = por %p93, %p94
      %p96 = scmp.ne.s32.totalorder %s87, %s88
      %p97 = scmp.eq.s32.totalorder %s23, 0
      %p98 = por %p96, %p97
      %p99 = scmp.ne.s32.totalorder %s87, %s88
      %p100 = scmp.eq.s32.totalorder %s24, 3
      %p101 = por %p99, %p100
      %p103 = scmp.ne.s32.totalorder %s88, %s102
      %p104 = scmp.eq.s32.totalorder %s24, 0
      %p105 = por %p103, %p104
      %s106 = ssub.s32 %s26, %s33
      %p107 = scmp.eq.s32.totalorder %s106, 0
      %s109 = sadd.s32 %s108, 1
      %s110 = scalar_select %p107, %s108, %s109
      %p113 = pneg %p107
      %p114 = scmp.eq.s32.totalorder %s18, 3
      %p115 = por %p113, %p114
      %p116 = scmp.ne.s32.totalorder %s108, %s111
      %p117 = scmp.eq.s32.totalorder %s18, 0
      %p118 = por %p116, %p117
      %p119 = scmp.ne.s32.totalorder %s108, %s111
      %p120 = scmp.eq.s32.totalorder %s23, 3
      %p121 = por %p119, %p120
      %p122 = scmp.ne.s32.totalorder %s111, %s112
      %p123 = scmp.eq.s32.totalorder %s23, 0
      %p124 = por %p122, %p123
      %p125 = scmp.ne.s32.totalorder %s111, %s112
      %p126 = scmp.eq.s32.totalorder %s24, 3
      %p127 = por %p125, %p126
      %p129 = scmp.ne.s32.totalorder %s112, %s128
      %p130 = scmp.eq.s32.totalorder %s24, 0
      %p131 = por %p129, %p130
      %s133 = sadd.s32 %s132, 1
      %p136 = scmp.eq.s32.totalorder %s18, 3
      %p137 = scmp.ne.s32.totalorder %s132, %s134
      %p138 = scmp.eq.s32.totalorder %s18, 0
      %p139 = por %p137, %p138
      %p140 = scmp.ne.s32.totalorder %s132, %s134
      %p141 = scmp.eq.s32.totalorder %s23, 3
      %p142 = por %p140, %p141
      %p143 = scmp.ne.s32.totalorder %s134, %s135
      %p144 = scmp.eq.s32.totalorder %s23, 0
      %p145 = por %p143, %p144
      %p146 = scmp.ne.s32.totalorder %s134, %s135
      %p147 = scmp.eq.s32.totalorder %s24, 3
      %p148 = por %p146, %p147
      %p150 = scmp.ne.s32.totalorder %s135, %s149
      %p151 = scmp.eq.s32.totalorder %s24, 0
      %p152 = por %p150, %p151
      %s154 = sadd.s32 %s153, 1
      %p157 = scmp.eq.s32.totalorder %s18, 3
      %p158 = scmp.ne.s32.totalorder %s153, %s155
      %p159 = scmp.eq.s32.totalorder %s18, 0
      %p160 = por %p158, %p159
      %p161 = scmp.ne.s32.totalorder %s153, %s155
      %p162 = scmp.eq.s32.totalorder %s23, 3
      %p163 = por %p161, %p162
      %p164 = scmp.ne.s32.totalorder %s155, %s156
      %p165 = scmp.eq.s32.totalorder %s23, 0
      %p166 = por %p164, %p165
      %p167 = scmp.ne.s32.totalorder %s155, %s156
      %p168 = scmp.eq.s32.totalorder %s24, 3
      %p169 = por %p167, %p168
      %p171 = scmp.ne.s32.totalorder %s156, %s170
      %p172 = scmp.eq.s32.totalorder %s24, 0
      %p173 = por %p171, %p172
      %s175 = sadd.s32 %s174, 1
      %p178 = scmp.eq.s32.totalorder %s18, 3
      %p179 = scmp.ne.s32.totalorder %s174, %s176
      %p180 = scmp.eq.s32.totalorder %s18, 0
      %p181 = por %p179, %p180
      %p182 = scmp.ne.s32.totalorder %s174, %s176
      %p183 = scmp.eq.s32.totalorder %s23, 3
      %p184 = por %p182, %p183
      %p185 = scmp.ne.s32.totalorder %s176, %s177
      %p186 = scmp.eq.s32.totalorder %s23, 0
      %p187 = por %p185, %p186
      %p188 = scmp.ne.s32.totalorder %s176, %s177
      %p189 = scmp.eq.s32.totalorder %s24, 3
      %p190 = por %p188, %p189
      %p192 = scmp.ne.s32.totalorder %s177, %s191
      %p193 = scmp.eq.s32.totalorder %s24, 0
      %p194 = por %p192, %p193
      %s196 = sadd.s32 %s195, 1
      %p199 = scmp.eq.s32.totalorder %s18, 3
      %p200 = scmp.ne.s32.totalorder %s195, %s197
      %p201 = scmp.eq.s32.totalorder %s18, 0
      %p202 = por %p200, %p201
      %p203 = scmp.ne.s32.totalorder %s195, %s197
      %p204 = scmp.eq.s32.totalorder %s23, 3
      %p205 = por %p203, %p204
      %p206 = scmp.ne.s32.totalorder %s197, %s198
      %p207 = scmp.eq.s32.totalorder %s23, 0
      %p208 = por %p206, %p207
      %p209 = scmp.ne.s32.totalorder %s197, %s198
      %p210 = scmp.eq.s32.totalorder %s24, 3
      %p211 = por %p209, %p210
      %p213 = scmp.ne.s32.totalorder %s198, %s212
      %p214 = scmp.eq.s32.totalorder %s24, 0
      %p215 = por %p213, %p214
      %s217 = sadd.s32 %s216, 1
      %p220 = scmp.eq.s32.totalorder %s18, 3
      %p221 = scmp.ne.s32.totalorder %s216, %s218
      %p222 = scmp.eq.s32.totalorder %s18, 0
      %p223 = por %p221, %p222
      %p224 = scmp.ne.s32.totalorder %s216, %s218
      %p225 = scmp.eq.s32.totalorder %s23, 3
      %p226 = por %p224, %p225
      %p227 = scmp.ne.s32.totalorder %s218, %s219
      %p228 = scmp.eq.s32.totalorder %s23, 0
      %p229 = por %p227, %p228
      %p230 = scmp.ne.s32.totalorder %s218, %s219
      %p231 = scmp.eq.s32.totalorder %s24, 3
      %p232 = por %p230, %p231
      %p234 = scmp.ne.s32.totalorder %s219, %s233
      %p235 = scmp.eq.s32.totalorder %s24, 0
      %p236 = por %p234, %p235
      %s237 = ssub.s32 %s25, %s37
      %p238 = scmp.eq.s32.totalorder %s237, 0
      %s240 = sadd.s32 %s239, 1
      %s241 = scalar_select %p238, %s239, %s240
      %p244 = pneg %p238
      %p245 = scmp.eq.s32.totalorder %s18, 3
      %p246 = por %p244, %p245
      %p247 = scmp.ne.s32.totalorder %s239, %s242
      %p248 = scmp.eq.s32.totalorder %s18, 0
      %p249 = por %p247, %p248
      %p250 = scmp.ne.s32.totalorder %s239, %s242
      %p251 = scmp.eq.s32.totalorder %s23, 3
      %p252 = por %p250, %p251
      %p253 = scmp.ne.s32.totalorder %s242, %s243
      %p254 = scmp.eq.s32.totalorder %s23, 0
      %p255 = por %p253, %p254
      %p256 = scmp.ne.s32.totalorder %s242, %s243
      %p257 = scmp.eq.s32.totalorder %s24, 3
      %p258 = por %p256, %p257
      %p260 = scmp.ne.s32.totalorder %s243, %s259
      %p261 = scmp.eq.s32.totalorder %s24, 0
      %p262 = por %p260, %p261
      %p263 = scmp.le.s32.totalorder 1, %s18
      %p264 = scmp.lt.s32.totalorder %s18, 5
      %p265 = pnand %p263, %p264
      %p266 = pneg %p265
      // Predicated region
      $region9: #{prediction_forward.1} parent=5 // pred_check
        _
      $region10: #{prediction_forward.1} parent=5 // pred_check_branch
        %268 = sbr.rel (%p265) target = $region12
      $region11: #{prediction_forward.1} parent=5 // pred_region
        %s269 = ssub.s32 %s18, 1
        // Predicated region
        $region13: #{prediction_forward.1} parent=11 // pred_check
          %p270 = pneg %p77
        $region14: #{prediction_forward.1} parent=11 // pred_check_branch
          %272 = sbr.rel (%p270) target = $region16
        $region15: #{prediction_forward.1} parent=11 // pred_region
          _
        $region16: #{prediction_forward.1} parent=11 // pred_fallthru
          _
        // Predicated region
        $region17: #{prediction_forward.1} parent=11 // pred_check
          %p273 = pneg %p98
        $region18: #{prediction_forward.1} parent=11 // pred_check_branch
          %275 = sbr.rel (%p273) target = $region20
        $region19: #{prediction_forward.1} parent=11 // pred_region
          _
        $region20: #{prediction_forward.1} parent=11 // pred_fallthru
          _
        // Predicated region
        $region21: #{prediction_forward.1} parent=11 // pred_check
          %p276 = pneg %p145
        $region22: #{prediction_forward.1} parent=11 // pred_check_branch
          %278 = sbr.rel (%p276) target = $region24
        $region23: #{prediction_forward.1} parent=11 // pred_region
          _
        $region24: #{prediction_forward.1} parent=11 // pred_fallthru
          _
        // Predicated region
        $region25: #{prediction_forward.1} parent=11 // pred_check
          %p279 = pneg %p166
        $region26: #{prediction_forward.1} parent=11 // pred_check_branch
          %281 = sbr.rel (%p279) target = $region28
        $region27: #{prediction_forward.1} parent=11 // pred_region
          _
        $region28: #{prediction_forward.1} parent=11 // pred_fallthru
          _
        // Predicated region
        $region29: #{prediction_forward.1} parent=11 // pred_check
          %p282 = pneg %p187
        $region30: #{prediction_forward.1} parent=11 // pred_check_branch
          %284 = sbr.rel (%p282) target = $region32
        $region31: #{prediction_forward.1} parent=11 // pred_region
          _
        $region32: #{prediction_forward.1} parent=11 // pred_fallthru
          _
        // Predicated region
        $region33: #{prediction_forward.1} parent=11 // pred_check
          %p285 = pneg %p208
        $region34: #{prediction_forward.1} parent=11 // pred_check_branch
          %287 = sbr.rel (%p285) target = $region36
        $region35: #{prediction_forward.1} parent=11 // pred_region
          _
        $region36: #{prediction_forward.1} parent=11 // pred_fallthru
          _
        // Predicated region
        $region37: #{prediction_forward.1} parent=11 // pred_check
          %p288 = pneg %p229
        $region38: #{prediction_forward.1} parent=11 // pred_check_branch
          %290 = sbr.rel (%p288) target = $region40
        $region39: #{prediction_forward.1} parent=11 // pred_region
          _
        $region40: #{prediction_forward.1} parent=11 // pred_fallthru
          _
      $region12: #{prediction_forward.1} parent=5 // pred_fallthru
        _
      %p291 = scmp.lt.s32.totalorder %s18, 4
      // Predicated region
      $region41: #{prediction_forward.1} parent=5 // pred_check
        %p292 = pneg %p291
      $region42: #{prediction_forward.1} parent=5 // pred_check_branch
        %294 = sbr.rel (%p292) target = $region44
      $region43: #{prediction_forward.1} parent=5 // pred_region
        // Predicated region
        $region45: #{prediction_forward.1} parent=43 // pred_check
          %p295 = pneg %p50
        $region46: #{prediction_forward.1} parent=43 // pred_check_branch
          %297 = sbr.rel (%p295) target = $region48
        $region47: #{prediction_forward.1} parent=43 // pred_region
          %p298 = scmp.lt.s32.totalorder %s25, 1
          %s299 = scalar_select %p298, %s25, 1
          %s300 = smul.addr %s299, 32
          %s301 = smul.addr %s300, 4
          %s302 = scalar_lea.vmem %s0, %s301
        $region48: #{prediction_forward.1} parent=43 // pred_fallthru
          _
        // Predicated region
        $region49: #{prediction_forward.1} parent=43 // pred_check
          %p303 = pneg %p118
        $region50: #{prediction_forward.1} parent=43 // pred_check_branch
          %305 = sbr.rel (%p303) target = $region52
        $region51: #{prediction_forward.1} parent=43 // pred_region
          %s306 = smul.u32 8, %s26
          %p307 = scmp.lt.s32.totalorder %s306, 15
          %s308 = scalar_select %p307, %s306, 15
          %s309 = smul.addr %s308, 2
          %s310 = smul.addr %s309, 4
          %s311 = scalar_lea.vmem %s3, %s310
          %s312 = smul.u32 8, %s26
        $region52: #{prediction_forward.1} parent=43 // pred_fallthru
          _
      $region44: #{prediction_forward.1} parent=5 // pred_fallthru
        _
      %p313 = scmp.le.s32.totalorder 1, %s18
      %p314 = scmp.lt.s32.totalorder %s18, 5
      %p315 = pnand %p313, %p314
      %p316 = pneg %p315
      // Predicated region
      $region53: #{prediction_forward.1} parent=5 // pred_check
        _
      $region54: #{prediction_forward.1} parent=5 // pred_check_branch
        %318 = sbr.rel (%p315) target = $region56
      $region55: #{prediction_forward.1} parent=5 // pred_region
        %s319 = ssub.s32 %s18, 1
        %p320 = scmp.lt.s32.totalorder %s27, 1
        %s321 = scalar_select %p320, %s27, 1
        %s322 = smul.addr %s321, 32
        %s323 = smul.addr %s322, 4
        %s324 = scalar_lea.vmem %s0, %s323
        %p325 = pneg %p56
        %p326 = pneg %p53
        %p327 = pneg %p77
        %p328 = pneg %p74
        %p329 = pneg %p98
        %p330 = pneg %p95
        %s331 = smul.u32 8, %s28
        %p332 = scmp.lt.s32.totalorder %s331, 15
        %s333 = scalar_select %p332, %s331, 15
        %s334 = smul.addr %s333, 2
        %s335 = smul.addr %s334, 4
        %s336 = scalar_lea.vmem %s3, %s335
        %p337 = pneg %p124
        %p338 = pneg %p121
        %p339 = pneg %p145
        %p340 = pneg %p142
        %p341 = pneg %p166
        %p342 = pneg %p163
        %p343 = pneg %p187
        %p344 = pneg %p184
        %p345 = pneg %p208
        %p346 = pneg %p205
        %p347 = pneg %p229
        %p348 = pneg %p226
        %p349 = pneg %p255
        %p350 = pneg %p252
        %s351 = sand.u32 %s242, 1
        %s352 = scalar_lea.sflag [#allocation5], %s351
        %s353 = sand.u32 %s242, 1
        %s354 = smul.addr %s353, 16
        %s355 = scalar_lea.vmem [#allocation4], %s354
        %p356 = scmp.lt.s32.totalorder %s27, 1
        %s357 = scalar_select %p356, %s27, 1
        %s358 = smul.addr %s357, 32
        %s359 = smul.addr %s358, 4
        %s360 = scalar_lea.vmem %s0, %s359
        %s361 = smul.u32 8, %s28
        %p362 = scmp.lt.s32.totalorder %s361, 15
        %s363 = scalar_select %p362, %s361, 15
        %s364 = smul.addr %s363, 2
        %s365 = smul.addr %s364, 4
        %s366 = scalar_lea.vmem %s3, %s365
        %s367 = smul.u32 8, %s28
        %p369 = scmp.eq.s32.totalorder %s28, 0
        // Predicated region
        $region57: #{prediction_forward.1} parent=55 // pred_check
          %p370 = pneg %p369
        $region58: #{prediction_forward.1} parent=55 // pred_check_branch
          %372 = sbr.rel (%p370) target = $region60
        $region59: #{prediction_forward.1} parent=55 // pred_region
          %v373 = vld [vmem:[%s360] sm:$0xf]
          %v374 = vld [vmem:[%s360 + $0x4] sm:$0xf]
          %v375 = vld [vmem:[%s360 + $0x8] sm:$0xf]
          %v376 = vld [vmem:[%s360 + $0xc] sm:$0xf]
          %v377 = vld [vmem:[%s360 + $0x10] sm:$0xf]
          %v378 = vld [vmem:[%s360 + $0x14] sm:$0xf]
          %v379 = vld [vmem:[%s360 + $0x18] sm:$0xf]
          %v380 = vld [vmem:[%s360 + $0x1c] sm:$0xf]
          %v381 = vld [vmem:[%s360 + $0x20] sm:$0xf]
          %v382 = vld [vmem:[%s360 + $0x24] sm:$0xf]
          %v383 = vld [vmem:[%s360 + $0x28] sm:$0xf]
          %v384 = vld [vmem:[%s360 + $0x2c] sm:$0xf]
          %v385 = vld [vmem:[%s360 + $0x30] sm:$0xf]
          %v386 = vld [vmem:[%s360 + $0x34] sm:$0xf]
          %v387 = vld [vmem:[%s360 + $0x38] sm:$0xf]
          %v388 = vld [vmem:[%s360 + $0x3c] sm:$0xf]
          %v389 = vld [vmem:[%s360 + $0x40] sm:$0xf]
          %v390 = vld [vmem:[%s360 + $0x44] sm:$0xf]
          %v391 = vld [vmem:[%s360 + $0x48] sm:$0xf]
          %v392 = vld [vmem:[%s360 + $0x4c] sm:$0xf]
          %v393 = vld [vmem:[%s360 + $0x50] sm:$0xf]
          %v394 = vld [vmem:[%s360 + $0x54] sm:$0xf]
          %v395 = vld [vmem:[%s360 + $0x58] sm:$0xf]
          %v396 = vld [vmem:[%s360 + $0x5c] sm:$0xf]
          %v397 = vld [vmem:[%s360 + $0x60] sm:$0xf]
          %v398 = vld [vmem:[%s360 + $0x64] sm:$0xf]
          %v399 = vld [vmem:[%s360 + $0x68] sm:$0xf]
          %v400 = vld [vmem:[%s360 + $0x6c] sm:$0xf]
          %v401 = vld [vmem:[%s360 + $0x70] sm:$0xf]
          %v402 = vld [vmem:[%s360 + $0x74] sm:$0xf]
          %v403 = vld [vmem:[%s360 + $0x78] sm:$0xf]
          %v404 = vld [vmem:[%s360 + $0x7c] sm:$0xf]
          %v405 = vld [vmem:[%s1] sm:$0xf]
          %v406 = vld [vmem:[%s1 + $0x4] sm:$0xf]
          %v407 = vld [vmem:[%s1 + $0x8] sm:$0xf]
          %v408 = vld [vmem:[%s1 + $0xc] sm:$0xf]
          %s409 = scalar_lea.vmem %s1, 16
          %v410 = vld [vmem:[%s409] sm:$0xf]
          %v411 = vld [vmem:[%s409 + $0x4] sm:$0xf]
          %v412 = vld [vmem:[%s409 + $0x8] sm:$0xf]
          %v413 = vld [vmem:[%s409 + $0xc] sm:$0xf]
          %v444 = vunpack.c.l.b16 %v374
          %v445 = vunpack.c.l.b16 %v375
          %v446 = vunpack.c.l.b16 %v376
          %v447 = vunpack.c.l.b16 %v377
          %v448 = vunpack.c.l.b16 %v378
          %v449 = vunpack.c.l.b16 %v379
          %v450 = vunpack.c.l.b16 %v380
          %v451 = vunpack.c.l.b16 %v381
          %v452 = vunpack.c.l.b16 %v382
          %v453 = vunpack.c.l.b16 %v383
          %v454 = vunpack.c.l.b16 %v384
          %v455 = vunpack.c.l.b16 %v385
          %v456 = vunpack.c.l.b16 %v386
          %v457 = vunpack.c.l.b16 %v387
          %v458 = vunpack.c.l.b16 %v388
          %v459 = vunpack.c.l.b16 %v389
          %v460 = vunpack.c.l.b16 %v390
          %v461 = vunpack.c.l.b16 %v391
          %v462 = vunpack.c.l.b16 %v392
          %v463 = vunpack.c.l.b16 %v393
          %v464 = vunpack.c.l.b16 %v394
          %v465 = vunpack.c.l.b16 %v395
          %v466 = vunpack.c.l.b16 %v396
          %v467 = vunpack.c.l.b16 %v397
          %v468 = vunpack.c.l.b16 %v398
          %v469 = vunpack.c.l.b16 %v399
          %v470 = vunpack.c.l.b16 %v400
          %v471 = vunpack.c.l.b16 %v401
          %v472 = vunpack.c.l.b16 %v402
          %v473 = vunpack.c.l.b16 %v403
          %v474 = vpack.c.b16 %v445, %v444
          %v475 = vpack.c.b16 %v447, %v446
          %v476 = vpack.c.b16 %v449, %v448
          %v477 = vpack.c.b16 %v451, %v450
          %v478 = vpack.c.b16 %v453, %v452
          %v479 = vpack.c.b16 %v455, %v454
          %v480 = vpack.c.b16 %v457, %v456
          %v481 = vpack.c.b16 %v459, %v458
          %v482 = vpack.c.b16 %v461, %v460
          %v483 = vpack.c.b16 %v463, %v462
          %v484 = vpack.c.b16 %v465, %v464
          %v485 = vpack.c.b16 %v467, %v466
          %v486 = vpack.c.b16 %v469, %v468
          %v487 = vpack.c.b16 %v471, %v470
          %v488 = vpack.c.b16 %v473, %v472
          %v493 = vunpack.c.l.b16 %v410
          %v494 = vunpack.c.l.b16 %v411
          %v495 = vunpack.c.l.b16 %v412
          %v496 = vunpack.c.l.b16 %v413
          %v497 = vpack.c.b16 %v494, %v493
          %v498 = vpack.c.b16 %v496, %v495
          %vm501 = vcmask 261120
          %v503 = vsel %vm501, %v474, 0
          %v506 = vsel %vm501, %v475, 0
          %v509 = vsel %vm501, %v476, 0
          %v512 = vsel %vm501, %v477, 0
          %v515 = vsel %vm501, %v478, 0
          %v518 = vsel %vm501, %v479, 0
          %v521 = vsel %vm501, %v480, 0
          %v524 = vsel %vm501, %v481, 0
          %v527 = vsel %vm501, %v482, 0
          %v530 = vsel %vm501, %v483, 0
          %v533 = vsel %vm501, %v484, 0
          %v536 = vsel %vm501, %v485, 0
          %v539 = vsel %vm501, %v486, 0
          %v542 = vsel %vm501, %v487, 0
          %v545 = vsel %vm501, %v488, 0
          %547 = vmatprep.subr.bf16.mxu0 0
          %548 = vmatpush1.bf16.msra.mxu0 %v497
          %549 = vmatprep.subr.bf16.mxu0 0
          %550 = vmatpush1.bf16.msra.mxu0 %v498
          %551 = vmatprep.subr.bf16.mxu0 0
          %552 = vmatpush1.bf16.msra.mxu0 0
          %553 = vmatprep.subr.bf16.mxu0 0
          %554 = vmatpush1.bf16.msra.mxu0 0
          %555 = vmatprep.subr.bf16.mxu0 0
          %556 = vmatpush1.bf16.msra.mxu0 0
          %557 = vmatprep.subr.bf16.mxu0 0
          %558 = vmatpush1.bf16.msra.mxu0 0
          %559 = vmatprep.subr.bf16.mxu0 0
          %560 = vmatpush1.bf16.msra.mxu0 0
          %561 = vmatprep.subr.bf16.mxu0 0
          %562 = vmatpush1.bf16.msra.mxu0 0
          %563 = vmatprep.subr.bf16.mxu0 0
          %564 = vmatpush1.bf16.msra.mxu0 0
          %565 = vmatprep.subr.bf16.mxu0 0
          %566 = vmatpush1.bf16.msra.mxu0 0
          %567 = vmatprep.subr.bf16.mxu0 0
          %568 = vmatpush1.bf16.msra.mxu0 0
          %569 = vmatprep.subr.bf16.mxu0 0
          %570 = vmatpush1.bf16.msra.mxu0 0
          %571 = vmatprep.subr.bf16.mxu0 0
          %572 = vmatpush1.bf16.msra.mxu0 0
          %573 = vmatprep.subr.bf16.mxu0 0
          %574 = vmatpush1.bf16.msra.mxu0 0
          %575 = vmatprep.subr.bf16.mxu0 0
          %576 = vmatpush1.bf16.msra.mxu0 0
          %577 = vmatprep.subr.bf16.mxu0 0
          %578 = vmatpush1.bf16.msra.mxu0 0
          %579 = vmatprep.mubr.bf16.mxu0 0
          %580 = vmatmul.mubr.bf16.gmra.mrb[0].mxu0 %v503
          %v581 = vpop.f32.mrb[0].mxu0
          %v582 = vadd.f32 0.0, %v581
          %v583 = vpop.f32.mrb[0].mxu0
          %v584 = vpop.f32.mrb[0].mxu0
          %v585 = vadd.f32 0.0, %v584
          %v586 = vpop.f32.mrb[0].mxu0
          %587 = vmatprep.mubr.bf16.mxu0 0
          %588 = vmatmul.mubr.bf16.gmra.mrb[0].mxu0 %v506
          %v589 = vpop.f32.mrb[0].mxu0
          %v590 = vadd.f32 0.0, %v589
          %v591 = vpop.f32.mrb[0].mxu0
          %v592 = vpop.f32.mrb[0].mxu0
          %v593 = vadd.f32 0.0, %v592
          %v594 = vpop.f32.mrb[0].mxu0
          %595 = vmatprep.mubr.bf16.mxu0 0
          %596 = vmatmul.mubr.bf16.gmra.mrb[0].mxu0 %v509
          %v597 = vpop.f32.mrb[0].mxu0
          %v598 = vadd.f32 0.0, %v597
          %v599 = vpop.f32.mrb[0].mxu0
          %v600 = vpop.f32.mrb[0].mxu0
          %v601 = vadd.f32 0.0, %v600
          %v602 = vpop.f32.mrb[0].mxu0
          %603 = vmatprep.mubr.bf16.mxu0 0
          %604 = vmatmul.mubr.bf16.gmra.mrb[0].mxu0 %v512
          %v605 = vpop.f32.mrb[0].mxu0
          %v606 = vadd.f32 0.0, %v605
          %v607 = vpop.f32.mrb[0].mxu0
          %v608 = vpop.f32.mrb[0].mxu0
          %v609 = vadd.f32 0.0, %v608
          %v610 = vpop.f32.mrb[0].mxu0
          %611 = vmatprep.mubr.bf16.mxu0 0
          %612 = vmatmul.mubr.bf16.gmra.mrb[0].mxu0 %v515
          %v613 = vpop.f32.mrb[0].mxu0
          %v614 = vadd.f32 0.0, %v613
          %v615 = vpop.f32.mrb[0].mxu0
          %v616 = vpop.f32.mrb[0].mxu0
          %v617 = vadd.f32 0.0, %v616
          %v618 = vpop.f32.mrb[0].mxu0
          %619 = vmatprep.mubr.bf16.mxu0 0
          %620 = vmatmul.mubr.bf16.gmra.mrb[0].mxu0 %v518
          %v621 = vpop.f32.mrb[0].mxu0
          %v622 = vadd.f32 0.0, %v621
          %v623 = vpop.f32.mrb[0].mxu0
          %v624 = vpop.f32.mrb[0].mxu0
          %v625 = vadd.f32 0.0, %v624
          %v626 = vpop.f32.mrb[0].mxu0
          %627 = vmatprep.mubr.bf16.mxu0 0
          %628 = vmatmul.mubr.bf16.gmra.mrb[0].mxu0 %v521
          %v629 = vpop.f32.mrb[0].mxu0
          %v630 = vadd.f32 0.0, %v629
          %v631 = vpop.f32.mrb[0].mxu0
          %v632 = vpop.f32.mrb[0].mxu0
          %v633 = vadd.f32 0.0, %v632
          %v634 = vpop.f32.mrb[0].mxu0
          %635 = vmatprep.mubr.bf16.mxu0 0
          %636 = vmatmul.mubr.bf16.gmra.mrb[0].mxu0 %v524
          %v637 = vpop.f32.mrb[0].mxu0
          %v638 = vadd.f32 0.0, %v637
          %v639 = vpop.f32.mrb[0].mxu0
          %v640 = vpop.f32.mrb[0].mxu0
          %v641 = vadd.f32 0.0, %v640
          %v642 = vpop.f32.mrb[0].mxu0
          %643 = vmatprep.mubr.bf16.mxu0 0
          %644 = vmatmul.mubr.bf16.gmra.mrb[0].mxu0 %v527
          %v645 = vpop.f32.mrb[0].mxu0
          %v646 = vadd.f32 0.0, %v645
          %v647 = vpop.f32.mrb[0].mxu0
          %v648 = vpop.f32.mrb[0].mxu0
          %v649 = vadd.f32 0.0, %v648
          %v650 = vpop.f32.mrb[0].mxu0
          %651 = vmatprep.mubr.bf16.mxu0 0
          %652 = vmatmul.mubr.bf16.gmra.mrb[0].mxu0 %v530
          %v653 = vpop.f32.mrb[0].mxu0
          %v654 = vadd.f32 0.0, %v653
          %v655 = vpop.f32.mrb[0].mxu0
          %v656 = vpop.f32.mrb[0].mxu0
          %v657 = vadd.f32 0.0, %v656
          %v658 = vpop.f32.mrb[0].mxu0
          %659 = vmatprep.mubr.bf16.mxu0 0
          %660 = vmatmul.mubr.bf16.gmra.mrb[0].mxu0 %v533
          %v661 = vpop.f32.mrb[0].mxu0
          %v662 = vadd.f32 0.0, %v661
          %v663 = vpop.f32.mrb[0].mxu0
          %v664 = vpop.f32.mrb[0].mxu0
          %v665 = vadd.f32 0.0, %v664
          %v666 = vpop.f32.mrb[0].mxu0
          %667 = vmatprep.mubr.bf16.mxu0 0
          %668 = vmatmul.mubr.bf16.gmra.mrb[0].mxu0 %v536
          %v669 = vpop.f32.mrb[0].mxu0
          %v670 = vadd.f32 0.0, %v669
          %v671 = vpop.f32.mrb[0].mxu0
          %v672 = vpop.f32.mrb[0].mxu0
          %v673 = vadd.f32 0.0, %v672
          %v674 = vpop.f32.mrb[0].mxu0
          %675 = vmatprep.mubr.bf16.mxu0 0
          %676 = vmatmul.mubr.bf16.gmra.mrb[0].mxu0 %v539
          %v677 = vpop.f32.mrb[0].mxu0
          %v678 = vadd.f32 0.0, %v677
          %v679 = vpop.f32.mrb[0].mxu0
          %v680 = vpop.f32.mrb[0].mxu0
          %v681 = vadd.f32 0.0, %v680
          %v682 = vpop.f32.mrb[0].mxu0
          %683 = vmatprep.mubr.bf16.mxu0 0
          %684 = vmatmul.mubr.bf16.gmra.mrb[0].mxu0 %v542
          %v685 = vpop.f32.mrb[0].mxu0
          %v686 = vadd.f32 0.0, %v685
          %v687 = vpop.f32.mrb[0].mxu0
          %v688 = vpop.f32.mrb[0].mxu0
          %v689 = vadd.f32 0.0, %v688
          %v690 = vpop.f32.mrb[0].mxu0
          %691 = vmatprep.mubr.bf16.mxu0 0
          %692 = vmatmul.mubr.bf16.gmra.mrb[0].mxu0 %v545
          %v693 = vpop.f32.mrb[0].mxu0
          %v694 = vadd.f32 0.0, %v693
          %v695 = vpop.f32.mrb[0].mxu0
          %v696 = vpop.f32.mrb[0].mxu0
          %v697 = vadd.f32 0.0, %v696
          %v698 = vpop.f32.mrb[0].mxu0
          %699 = vdwg.mxu0
          %v701 = vunpack.c.l.b16 %v373
          %v702 = vpack.c.b16 %v444, %v701
          %v703 = vpack.c.b16 %v446, %v445
          %v704 = vpack.c.b16 %v448, %v447
          %v705 = vpack.c.b16 %v450, %v449
          %v706 = vpack.c.b16 %v452, %v451
          %v707 = vpack.c.b16 %v454, %v453
          %v708 = vpack.c.b16 %v456, %v455
          %v709 = vpack.c.b16 %v458, %v457
          %v710 = vpack.c.b16 %v460, %v459
          %v711 = vpack.c.b16 %v462, %v461
          %v712 = vpack.c.b16 %v464, %v463
          %v713 = vpack.c.b16 %v466, %v465
          %v714 = vpack.c.b16 %v468, %v467
          %v715 = vpack.c.b16 %v470, %v469
          %v716 = vpack.c.b16 %v472, %v471
          %v721 = vunpack.c.l.b16 %v405
          %v722 = vunpack.c.l.b16 %v406
          %v723 = vunpack.c.l.b16 %v407
          %v724 = vunpack.c.l.b16 %v408
          %v725 = vpack.c.b16 %v722, %v721
          %v726 = vpack.c.b16 %v724, %v723
          %v730 = vsel %vm501, %v702, 0
          %v733 = vsel %vm501, %v703, 0
          %v736 = vsel %vm501, %v704, 0
          %v739 = vsel %vm501, %v705, 0
          %v742 = vsel %vm501, %v706, 0
          %v745 = vsel %vm501, %v707, 0
          %v748 = vsel %vm501, %v708, 0
          %v751 = vsel %vm501, %v709, 0
          %v754 = vsel %vm501, %v710, 0
          %v757 = vsel %vm501, %v711, 0
          %v760 = vsel %vm501, %v712, 0
          %v763 = vsel %vm501, %v713, 0
          %v766 = vsel %vm501, %v714, 0
          %v769 = vsel %vm501, %v715, 0
          %v772 = vsel %vm501, %v716, 0
          %774 = vmatprep.subr.bf16.mxu0 0
          %775 = vmatpush1.bf16.msra.mxu0 %v725
          %776 = vmatprep.subr.bf16.mxu0 0
          %777 = vmatpush1.bf16.msra.mxu0 %v726
          %778 = vmatprep.subr.bf16.mxu0 0
          %779 = vmatpush1.bf16.msra.mxu0 0
          %780 = vmatprep.subr.bf16.mxu0 0
          %781 = vmatpush1.bf16.msra.mxu0 0
          %782 = vmatprep.subr.bf16.mxu0 0
          %783 = vmatpush1.bf16.msra.mxu0 0
          %784 = vmatprep.subr.bf16.mxu0 0
          %785 = vmatpush1.bf16.msra.mxu0 0
          %786 = vmatprep.subr.bf16.mxu0 0
          %787 = vmatpush1.bf16.msra.mxu0 0
          %788 = vmatprep.subr.bf16.mxu0 0
          %789 = vmatpush1.bf16.msra.mxu0 0
          %790 = vmatprep.subr.bf16.mxu0 0
          %791 = vmatpush1.bf16.msra.mxu0 0
          %792 = vmatprep.subr.bf16.mxu0 0
          %793 = vmatpush1.bf16.msra.mxu0 0
          %794 = vmatprep.subr.bf16.mxu0 0
          %795 = vmatpush1.bf16.msra.mxu0 0
          %796 = vmatprep.subr.bf16.mxu0 0
          %797 = vmatpush1.bf16.msra.mxu0 0
          %798 = vmatprep.subr.bf16.mxu0 0
          %799 = vmatpush1.bf16.msra.mxu0 0
          %800 = vmatprep.subr.bf16.mxu0 0
          %801 = vmatpush1.bf16.msra.mxu0 0
          %802 = vmatprep.subr.bf16.mxu0 0
          %803 = vmatpush1.bf16.msra.mxu0 0
          %804 = vmatprep.subr.bf16.mxu0 0
          %805 = vmatpush1.bf16.msra.mxu0 0
          %806 = vmatprep.mubr.bf16.mxu0 0
          %807 = vmatmul.mubr.bf16.gmra.mrb[0].mxu0 %v730
          %v808 = vpop.f32.mrb[0].mxu0
          %v809 = vadd.f32 %v582, %v808
          %v810 = vpop.f32.mrb[0].mxu0
          %v811 = vpop.f32.mrb[0].mxu0
          %v812 = vadd.f32 %v585, %v811
          %v813 = vpop.f32.mrb[0].mxu0
          %814 = vmatprep.mubr.bf16.mxu0 0
          %815 = vmatmul.mubr.bf16.gmra.mrb[0].mxu0 %v733
          %v816 = vpop.f32.mrb[0].mxu0
          %v817 = vadd.f32 %v590, %v816
          %v818 = vpop.f32.mrb[0].mxu0
          %v819 = vpop.f32.mrb[0].mxu0
          %v820 = vadd.f32 %v593, %v819
          %v821 = vpop.f32.mrb[0].mxu0
          %822 = vmatprep.mubr.bf16.mxu0 0
          %823 = vmatmul.mubr.bf16.gmra.mrb[0].mxu0 %v736
          %v824 = vpop.f32.mrb[0].mxu0
          %v825 = vadd.f32 %v598, %v824
          %v826 = vpop.f32.mrb[0].mxu0
          %v827 = vpop.f32.mrb[0].mxu0
          %v828 = vadd.f32 %v601, %v827
          %v829 = vpop.f32.mrb[0].mxu0
          %830 = vmatprep.mubr.bf16.mxu0 0
          %831 = vmatmul.mubr.bf16.gmra.mrb[0].mxu0 %v739
          %v832 = vpop.f32.mrb[0].mxu0
          %v833 = vadd.f32 %v606, %v832
          %v834 = vpop.f32.mrb[0].mxu0
          %v835 = vpop.f32.mrb[0].mxu0
          %v836 = vadd.f32 %v609, %v835
          %v837 = vpop.f32.mrb[0].mxu0
          %838 = vmatprep.mubr.bf16.mxu0 0
          %839 = vmatmul.mubr.bf16.gmra.mrb[0].mxu0 %v742
          %v840 = vpop.f32.mrb[0].mxu0
          %v841 = vadd.f32 %v614, %v840
          %v842 = vpop.f32.mrb[0].mxu0
          %v843 = vpop.f32.mrb[0].mxu0
          %v844 = vadd.f32 %v617, %v843
          %v845 = vpop.f32.mrb[0].mxu0
          %846 = vmatprep.mubr.bf16.mxu0 0
          %847 = vmatmul.mubr.bf16.gmra.mrb[0].mxu0 %v745
          %v848 = vpop.f32.mrb[0].mxu0
          %v849 = vadd.f32 %v622, %v848
          %v850 = vpop.f32.mrb[0].mxu0
          %v851 = vpop.f32.mrb[0].mxu0
          %v852 = vadd.f32 %v625, %v851
          %v853 = vpop.f32.mrb[0].mxu0
          %854 = vmatprep.mubr.bf16.mxu0 0
          %855 = vmatmul.mubr.bf16.gmra.mrb[0].mxu0 %v748
          %v856 = vpop.f32.mrb[0].mxu0
          %v857 = vadd.f32 %v630, %v856
          %v858 = vpop.f32.mrb[0].mxu0
          %v859 = vpop.f32.mrb[0].mxu0
          %v860 = vadd.f32 %v633, %v859
          %v861 = vpop.f32.mrb[0].mxu0
          %862 = vmatprep.mubr.bf16.mxu0 0
          %863 = vmatmul.mubr.bf16.gmra.mrb[0].mxu0 %v751
          %v864 = vpop.f32.mrb[0].mxu0
          %v865 = vadd.f32 %v638, %v864
          %v866 = vpop.f32.mrb[0].mxu0
          %v867 = vpop.f32.mrb[0].mxu0
          %v868 = vadd.f32 %v641, %v867
          %v869 = vpop.f32.mrb[0].mxu0
          %870 = vmatprep.mubr.bf16.mxu0 0
          %871 = vmatmul.mubr.bf16.gmra.mrb[0].mxu0 %v754
          %v872 = vpop.f32.mrb[0].mxu0
          %v873 = vadd.f32 %v646, %v872
          %v874 = vpop.f32.mrb[0].mxu0
          %v875 = vpop.f32.mrb[0].mxu0
          %v876 = vadd.f32 %v649, %v875
          %v877 = vpop.f32.mrb[0].mxu0
          %878 = vmatprep.mubr.bf16.mxu0 0
          %879 = vmatmul.mubr.bf16.gmra.mrb[0].mxu0 %v757
          %v880 = vpop.f32.mrb[0].mxu0
          %v881 = vadd.f32 %v654, %v880
          %v882 = vpop.f32.mrb[0].mxu0
          %v883 = vpop.f32.mrb[0].mxu0
          %v884 = vadd.f32 %v657, %v883
          %v885 = vpop.f32.mrb[0].mxu0
          %886 = vmatprep.mubr.bf16.mxu0 0
          %887 = vmatmul.mubr.bf16.gmra.mrb[0].mxu0 %v760
          %v888 = vpop.f32.mrb[0].mxu0
          %v889 = vadd.f32 %v662, %v888
          %v890 = vpop.f32.mrb[0].mxu0
          %v891 = vpop.f32.mrb[0].mxu0
          %v892 = vadd.f32 %v665, %v891
          %v893 = vpop.f32.mrb[0].mxu0
          %894 = vmatprep.mubr.bf16.mxu0 0
          %895 = vmatmul.mubr.bf16.gmra.mrb[0].mxu0 %v763
          %v896 = vpop.f32.mrb[0].mxu0
          %v897 = vadd.f32 %v670, %v896
          %v898 = vpop.f32.mrb[0].mxu0
          %v899 = vpop.f32.mrb[0].mxu0
          %v900 = vadd.f32 %v673, %v899
          %v901 = vpop.f32.mrb[0].mxu0
          %902 = vmatprep.mubr.bf16.mxu0 0
          %903 = vmatmul.mubr.bf16.gmra.mrb[0].mxu0 %v766
          %v904 = vpop.f32.mrb[0].mxu0
          %v905 = vadd.f32 %v678, %v904
          %v906 = vpop.f32.mrb[0].mxu0
          %v907 = vpop.f32.mrb[0].mxu0
          %v908 = vadd.f32 %v681, %v907
          %v909 = vpop.f32.mrb[0].mxu0
          %910 = vmatprep.mubr.bf16.mxu0 0
          %911 = vmatmul.mubr.bf16.gmra.mrb[0].mxu0 %v769
          %v912 = vpop.f32.mrb[0].mxu0
          %v913 = vadd.f32 %v686, %v912
          %v914 = vpop.f32.mrb[0].mxu0
          %v915 = vpop.f32.mrb[0].mxu0
          %v916 = vadd.f32 %v689, %v915
          %v917 = vpop.f32.mrb[0].mxu0
          %918 = vmatprep.mubr.bf16.mxu0 0
          %919 = vmatmul.mubr.bf16.gmra.mrb[0].mxu0 %v772
          %v920 = vpop.f32.mrb[0].mxu0
          %v921 = vadd.f32 %v694, %v920
          %v922 = vpop.f32.mrb[0].mxu0
          %v923 = vpop.f32.mrb[0].mxu0
          %v924 = vadd.f32 %v697, %v923
          %v925 = vpop.f32.mrb[0].mxu0
          %926 = vdwg.mxu0
          %s927 = scalar_lea.vmem %s1, 32
          %v928 = vld [vmem:[%s927] sm:$0xf]
          %v929 = vld [vmem:[%s927 + $0x4] sm:$0xf]
          %v930 = vld [vmem:[%s927 + $0x8] sm:$0xf]
          %v931 = vld [vmem:[%s927 + $0xc] sm:$0xf]
          %v933 = vunpack.c.l.b16 %v404
          %v934 = vpack.c.b16 %v933, %v473
          %v939 = vunpack.c.l.b16 %v928
          %v940 = vunpack.c.l.b16 %v929
          %v941 = vunpack.c.l.b16 %v930
          %v942 = vunpack.c.l.b16 %v931
          %v943 = vpack.c.b16 %v940, %v939
          %v944 = vpack.c.b16 %v942, %v941
          %v948 = vsel %vm501, %v934, 0
          %950 = vmatprep.subr.bf16.mxu0 0
          %951 = vmatpush1.bf16.msra.mxu0 %v943
          %952 = vmatprep.subr.bf16.mxu0 0
          %953 = vmatpush1.bf16.msra.mxu0 %v944
          %954 = vmatprep.subr.bf16.mxu0 0
          %955 = vmatpush1.bf16.msra.mxu0 0
          %956 = vmatprep.subr.bf16.mxu0 0
          %957 = vmatpush1.bf16.msra.mxu0 0
          %958 = vmatprep.subr.bf16.mxu0 0
          %959 = vmatpush1.bf16.msra.mxu0 0
          %960 = vmatprep.subr.bf16.mxu0 0
          %961 = vmatpush1.bf16.msra.mxu0 0
          %962 = vmatprep.subr.bf16.mxu0 0
          %963 = vmatpush1.bf16.msra.mxu0 0
          %964 = vmatprep.subr.bf16.mxu0 0
          %965 = vmatpush1.bf16.msra.mxu0 0
          %966 = vmatprep.subr.bf16.mxu0 0
          %967 = vmatpush1.bf16.msra.mxu0 0
          %968 = vmatprep.subr.bf16.mxu0 0
          %969 = vmatpush1.bf16.msra.mxu0 0
          %970 = vmatprep.subr.bf16.mxu0 0
          %971 = vmatpush1.bf16.msra.mxu0 0
          %972 = vmatprep.subr.bf16.mxu0 0
          %973 = vmatpush1.bf16.msra.mxu0 0
          %974 = vmatprep.subr.bf16.mxu0 0
          %975 = vmatpush1.bf16.msra.mxu0 0
          %976 = vmatprep.subr.bf16.mxu0 0
          %977 = vmatpush1.bf16.msra.mxu0 0
          %978 = vmatprep.subr.bf16.mxu0 0
          %979 = vmatpush1.bf16.msra.mxu0 0
          %980 = vmatprep.subr.bf16.mxu0 0
          %981 = vmatpush1.bf16.msra.mxu0 0
          %982 = vmatprep.mubr.bf16.mxu0 0
          %983 = vmatmul.mubr.bf16.gmra.mrb[0].mxu0 %v733
          %v984 = vpop.f32.mrb[0].mxu0
          %v985 = vadd.f32 0.0, %v984
          %v986 = vpop.f32.mrb[0].mxu0
          %v987 = vpop.f32.mrb[0].mxu0
          %v988 = vadd.f32 0.0, %v987
          %v989 = vpop.f32.mrb[0].mxu0
          %990 = vmatprep.mubr.bf16.mxu0 0
          %991 = vmatmul.mubr.bf16.gmra.mrb[0].mxu0 %v736
          %v992 = vpop.f32.mrb[0].mxu0
          %v993 = vadd.f32 0.0, %v992
          %v994 = vpop.f32.mrb[0].mxu0
          %v995 = vpop.f32.mrb[0].mxu0
          %v996 = vadd.f32 0.0, %v995
          %v997 = vpop.f32.mrb[0].mxu0
          %998 = vmatprep.mubr.bf16.mxu0 0
          %999 = vmatmul.mubr.bf16.gmra.mrb[0].mxu0 %v739
          %v1000 = vpop.f32.mrb[0].mxu0
          %v1001 = vadd.f32 0.0, %v1000
          %v1002 = vpop.f32.mrb[0].mxu0
          %v1003 = vpop.f32.mrb[0].mxu0
          %v1004 = vadd.f32 0.0, %v1003
          %v1005 = vpop.f32.mrb[0].mxu0
          %1006 = vmatprep.mubr.bf16.mxu0 0
          %1007 = vmatmul.mubr.bf16.gmra.mrb[0].mxu0 %v742
          %v1008 = vpop.f32.mrb[0].mxu0
          %v1009 = vadd.f32 0.0, %v1008
          %v1010 = vpop.f32.mrb[0].mxu0
          %v1011 = vpop.f32.mrb[0].mxu0
          %v1012 = vadd.f32 0.0, %v1011
          %v1013 = vpop.f32.mrb[0].mxu0
          %1014 = vmatprep.mubr.bf16.mxu0 0
          %1015 = vmatmul.mubr.bf16.gmra.mrb[0].mxu0 %v745
          %v1016 = vpop.f32.mrb[0].mxu0
          %v1017 = vadd.f32 0.0, %v1016
          %v1018 = vpop.f32.mrb[0].mxu0
          %v1019 = vpop.f32.mrb[0].mxu0
          %v1020 = vadd.f32 0.0, %v1019
          %v1021 = vpop.f32.mrb[0].mxu0
          %1022 = vmatprep.mubr.bf16.mxu0 0
          %1023 = vmatmul.mubr.bf16.gmra.mrb[0].mxu0 %v748
          %v1024 = vpop.f32.mrb[0].mxu0
          %v1025 = vadd.f32 0.0, %v1024
          %v1026 = vpop.f32.mrb[0].mxu0
          %v1027 = vpop.f32.mrb[0].mxu0
          %v1028 = vadd.f32 0.0, %v1027
          %v1029 = vpop.f32.mrb[0].mxu0
          %1030 = vmatprep.mubr.bf16.mxu0 0
          %1031 = vmatmul.mubr.bf16.gmra.mrb[0].mxu0 %v751
          %v1032 = vpop.f32.mrb[0].mxu0
          %v1033 = vadd.f32 0.0, %v1032
          %v1034 = vpop.f32.mrb[0].mxu0
          %v1035 = vpop.f32.mrb[0].mxu0
          %v1036 = vadd.f32 0.0, %v1035
          %v1037 = vpop.f32.mrb[0].mxu0
          %1038 = vmatprep.mubr.bf16.mxu0 0
          %1039 = vmatmul.mubr.bf16.gmra.mrb[0].mxu0 %v754
          %v1040 = vpop.f32.mrb[0].mxu0
          %v1041 = vadd.f32 0.0, %v1040
          %v1042 = vpop.f32.mrb[0].mxu0
          %v1043 = vpop.f32.mrb[0].mxu0
          %v1044 = vadd.f32 0.0, %v1043
          %v1045 = vpop.f32.mrb[0].mxu0
          %1046 = vmatprep.mubr.bf16.mxu0 0
          %1047 = vmatmul.mubr.bf16.gmra.mrb[0].mxu0 %v757
          %v1048 = vpop.f32.mrb[0].mxu0
          %v1049 = vadd.f32 0.0, %v1048
          %v1050 = vpop.f32.mrb[0].mxu0
          %v1051 = vpop.f32.mrb[0].mxu0
          %v1052 = vadd.f32 0.0, %v1051
          %v1053 = vpop.f32.mrb[0].mxu0
          %1054 = vmatprep.mubr.bf16.mxu0 0
          %1055 = vmatmul.mubr.bf16.gmra.mrb[0].mxu0 %v760
          %v1056 = vpop.f32.mrb[0].mxu0
          %v1057 = vadd.f32 0.0, %v1056
          %v1058 = vpop.f32.mrb[0].mxu0
          %v1059 = vpop.f32.mrb[0].mxu0
          %v1060 = vadd.f32 0.0, %v1059
          %v1061 = vpop.f32.mrb[0].mxu0
          %1062 = vmatprep.mubr.bf16.mxu0 0
          %1063 = vmatmul.mubr.bf16.gmra.mrb[0].mxu0 %v763
          %v1064 = vpop.f32.mrb[0].mxu0
          %v1065 = vadd.f32 0.0, %v1064
          %v1066 = vpop.f32.mrb[0].mxu0
          %v1067 = vpop.f32.mrb[0].mxu0
          %v1068 = vadd.f32 0.0, %v1067
          %v1069 = vpop.f32.mrb[0].mxu0
          %1070 = vmatprep.mubr.bf16.mxu0 0
          %1071 = vmatmul.mubr.bf16.gmra.mrb[0].mxu0 %v766
          %v1072 = vpop.f32.mrb[0].mxu0
          %v1073 = vadd.f32 0.0, %v1072
          %v1074 = vpop.f32.mrb[0].mxu0
          %v1075 = vpop.f32.mrb[0].mxu0
          %v1076 = vadd.f32 0.0, %v1075
          %v1077 = vpop.f32.mrb[0].mxu0
          %1078 = vmatprep.mubr.bf16.mxu0 0
          %1079 = vmatmul.mubr.bf16.gmra.mrb[0].mxu0 %v769
          %v1080 = vpop.f32.mrb[0].mxu0
          %v1081 = vadd.f32 0.0, %v1080
          %v1082 = vpop.f32.mrb[0].mxu0
          %v1083 = vpop.f32.mrb[0].mxu0
          %v1084 = vadd.f32 0.0, %v1083
          %v1085 = vpop.f32.mrb[0].mxu0
          %1086 = vmatprep.mubr.bf16.mxu0 0
          %1087 = vmatmul.mubr.bf16.gmra.mrb[0].mxu0 %v772
          %v1088 = vpop.f32.mrb[0].mxu0
          %v1089 = vadd.f32 0.0, %v1088
          %v1090 = vpop.f32.mrb[0].mxu0
          %v1091 = vpop.f32.mrb[0].mxu0
          %v1092 = vadd.f32 0.0, %v1091
          %v1093 = vpop.f32.mrb[0].mxu0
          %1094 = vmatprep.mubr.bf16.mxu0 0
          %1095 = vmatmul.mubr.bf16.gmra.mrb[0].mxu0 %v948
          %v1096 = vpop.f32.mrb[0].mxu0
          %v1097 = vadd.f32 0.0, %v1096
          %v1098 = vpop.f32.mrb[0].mxu0
          %v1099 = vpop.f32.mrb[0].mxu0
          %v1100 = vadd.f32 0.0, %v1099
          %v1101 = vpop.f32.mrb[0].mxu0
          %1102 = vdwg.mxu0
          %v1103 = vadd.f32 %v809, %v985
          %v1104 = vadd.f32 %v812, %v988
          %v1105 = vadd.f32 %v817, %v993
          %v1106 = vadd.f32 %v820, %v996
          %v1107 = vadd.f32 %v825, %v1001
          %v1108 = vadd.f32 %v828, %v1004
          %v1109 = vadd.f32 %v833, %v1009
          %v1110 = vadd.f32 %v836, %v1012
          %v1111 = vadd.f32 %v841, %v1017
          %v1112 = vadd.f32 %v844, %v1020
          %v1113 = vadd.f32 %v849, %v1025
          %v1114 = vadd.f32 %v852, %v1028
          %v1115 = vadd.f32 %v857, %v1033
          %v1116 = vadd.f32 %v860, %v1036
          %v1117 = vadd.f32 %v865, %v1041
          %v1118 = vadd.f32 %v868, %v1044
          %v1119 = vadd.f32 %v873, %v1049
          %v1120 = vadd.f32 %v876, %v1052
          %v1121 = vadd.f32 %v881, %v1057
          %v1122 = vadd.f32 %v884, %v1060
          %v1123 = vadd.f32 %v889, %v1065
          %v1124 = vadd.f32 %v892, %v1068
          %v1125 = vadd.f32 %v897, %v1073
          %v1126 = vadd.f32 %v900, %v1076
          %v1127 = vadd.f32 %v905, %v1081
          %v1128 = vadd.f32 %v908, %v1084
          %v1129 = vadd.f32 %v913, %v1089
          %v1130 = vadd.f32 %v916, %v1092
          %v1131 = vadd.f32 %v921, %v1097
          %v1132 = vadd.f32 %v924, %v1100
          %v1133 = vld [vmem:[%s2] sm:$0x1]
          %v1135 = vlaneseq
          %v1136 = vshrl.u32 %v1135, 7
          %v1137 = vsub.s32 0, %v1136
          %v1138 = vrot.slane %v1133, %v1137
          %v1140 = vadd.f32 %v1103, %v1138
          %v1141 = vadd.f32 %v1104, %v1138
          %v1142 = vadd.f32 %v1105, %v1138
          %v1143 = vadd.f32 %v1106, %v1138
          %v1144 = vadd.f32 %v1107, %v1138
          %v1145 = vadd.f32 %v1108, %v1138
          %v1146 = vadd.f32 %v1109, %v1138
          %v1147 = vadd.f32 %v1110, %v1138
          %v1148 = vadd.f32 %v1111, %v1138
          %v1149 = vadd.f32 %v1112, %v1138
          %v1150 = vadd.f32 %v1113, %v1138
          %v1151 = vadd.f32 %v1114, %v1138
          %v1152 = vadd.f32 %v1115, %v1138
          %v1153 = vadd.f32 %v1116, %v1138
          %v1154 = vadd.f32 %v1117, %v1138
          %v1155 = vadd.f32 %v1118, %v1138
          %v1156 = vadd.f32 %v1119, %v1138
          %v1157 = vadd.f32 %v1120, %v1138
          %v1158 = vadd.f32 %v1121, %v1138
          %v1159 = vadd.f32 %v1122, %v1138
          %v1160 = vadd.f32 %v1123, %v1138
          %v1161 = vadd.f32 %v1124, %v1138
          %v1162 = vadd.f32 %v1125, %v1138
          %v1163 = vadd.f32 %v1126, %v1138
          %v1164 = vadd.f32 %v1127, %v1138
          %v1165 = vadd.f32 %v1128, %v1138
          %v1166 = vadd.f32 %v1129, %v1138
          %v1167 = vadd.f32 %v1130, %v1138
          %v1168 = vadd.f32 %v1131, %v1138
          %v1169 = vadd.f32 %v1132, %v1138
          %vm1170 = vcmp.gt.f32.partialorder %v1140, 0.0
          %vm1171 = vcmp.gt.f32.partialorder %v1141, 0.0
          %vm1172 = vcmp.gt.f32.partialorder %v1142, 0.0
          %vm1173 = vcmp.gt.f32.partialorder %v1143, 0.0
          %vm1174 = vcmp.gt.f32.partialorder %v1144, 0.0
          %vm1175 = vcmp.gt.f32.partialorder %v1145, 0.0
          %vm1176 = vcmp.gt.f32.partialorder %v1146, 0.0
          %vm1177 = vcmp.gt.f32.partialorder %v1147, 0.0
          %vm1178 = vcmp.gt.f32.partialorder %v1148, 0.0
          %vm1179 = vcmp.gt.f32.partialorder %v1149, 0.0
          %vm1180 = vcmp.gt.f32.partialorder %v1150, 0.0
          %vm1181 = vcmp.gt.f32.partialorder %v1151, 0.0
          %vm1182 = vcmp.gt.f32.partialorder %v1152, 0.0
          %vm1183 = vcmp.gt.f32.partialorder %v1153, 0.0
          %vm1184 = vcmp.gt.f32.partialorder %v1154, 0.0
          %vm1185 = vcmp.gt.f32.partialorder %v1155, 0.0
          %vm1186 = vcmp.gt.f32.partialorder %v1156, 0.0
          %vm1187 = vcmp.gt.f32.partialorder %v1157, 0.0
          %vm1188 = vcmp.gt.f32.partialorder %v1158, 0.0
          %vm1189 = vcmp.gt.f32.partialorder %v1159, 0.0
          %vm1190 = vcmp.gt.f32.partialorder %v1160, 0.0
          %vm1191 = vcmp.gt.f32.partialorder %v1161, 0.0
          %vm1192 = vcmp.gt.f32.partialorder %v1162, 0.0
          %vm1193 = vcmp.gt.f32.partialorder %v1163, 0.0
          %vm1194 = vcmp.gt.f32.partialorder %v1164, 0.0
          %vm1195 = vcmp.gt.f32.partialorder %v1165, 0.0
          %vm1196 = vcmp.gt.f32.partialorder %v1166, 0.0
          %vm1197 = vcmp.gt.f32.partialorder %v1167, 0.0
          %vm1198 = vcmp.gt.f32.partialorder %v1168, 0.0
          %vm1199 = vcmp.gt.f32.partialorder %v1169, 0.0
          %v1200 = vmin.f32 %v1140, 0.0
          %v1201 = vmin.f32 %v1141, 0.0
          %v1202 = vmin.f32 %v1142, 0.0
          %v1203 = vmin.f32 %v1143, 0.0
          %v1204 = vmin.f32 %v1144, 0.0
          %v1205 = vmin.f32 %v1145, 0.0
          %v1206 = vmin.f32 %v1146, 0.0
          %v1207 = vmin.f32 %v1147, 0.0
          %v1208 = vmin.f32 %v1148, 0.0
          %v1209 = vmin.f32 %v1149, 0.0
          %v1210 = vmin.f32 %v1150, 0.0
          %v1211 = vmin.f32 %v1151, 0.0
          %v1212 = vmin.f32 %v1152, 0.0
          %v1213 = vmin.f32 %v1153, 0.0
          %v1214 = vmin.f32 %v1154, 0.0
          %v1215 = vmin.f32 %v1155, 0.0
          %v1216 = vmin.f32 %v1156, 0.0
          %v1217 = vmin.f32 %v1157, 0.0
          %v1218 = vmin.f32 %v1158, 0.0
          %v1219 = vmin.f32 %v1159, 0.0
          %v1220 = vmin.f32 %v1160, 0.0
          %v1221 = vmin.f32 %v1161, 0.0
          %v1222 = vmin.f32 %v1162, 0.0
          %v1223 = vmin.f32 %v1163, 0.0
          %v1224 = vmin.f32 %v1164, 0.0
          %v1225 = vmin.f32 %v1165, 0.0
          %v1226 = vmin.f32 %v1166, 0.0
          %v1227 = vmin.f32 %v1167, 0.0
          %v1228 = vmin.f32 %v1168, 0.0
          %v1229 = vmin.f32 %v1169, 0.0
          %v1230 = vmul.f32 %v1200, 1.442695
          %v1231 = vpow.pop %v1230
          %v1232 = vmul.f32 %v1201, 1.442695
          %v1233 = vpow.pop %v1232
          %v1234 = vmul.f32 %v1202, 1.442695
          %v1235 = vpow.pop %v1234
          %v1236 = vmul.f32 %v1203, 1.442695
          %v1237 = vpow.pop %v1236
          %v1238 = vmul.f32 %v1204, 1.442695
          %v1239 = vpow.pop %v1238
          %v1240 = vmul.f32 %v1205, 1.442695
          %v1241 = vpow.pop %v1240
          %v1242 = vmul.f32 %v1206, 1.442695
          %v1243 = vpow.pop %v1242
          %v1244 = vmul.f32 %v1207, 1.442695
          %v1245 = vpow.pop %v1244
          %v1246 = vmul.f32 %v1208, 1.442695
          %v1247 = vpow.pop %v1246
          %v1248 = vmul.f32 %v1209, 1.442695
          %v1249 = vpow.pop %v1248
          %v1250 = vmul.f32 %v1210, 1.442695
          %v1251 = vpow.pop %v1250
          %v1252 = vmul.f32 %v1211, 1.442695
          %v1253 = vpow.pop %v1252
          %v1254 = vmul.f32 %v1212, 1.442695
          %v1255 = vpow.pop %v1254
          %v1256 = vmul.f32 %v1213, 1.442695
          %v1257 = vpow.pop %v1256
          %v1258 = vmul.f32 %v1214, 1.442695
          %v1259 = vpow.pop %v1258
          %v1260 = vmul.f32 %v1215, 1.442695
          %v1261 = vpow.pop %v1260
          %v1262 = vmul.f32 %v1216, 1.442695
          %v1263 = vpow.pop %v1262
          %v1264 = vmul.f32 %v1217, 1.442695
          %v1265 = vpow.pop %v1264
          %v1266 = vmul.f32 %v1218, 1.442695
          %v1267 = vpow.pop %v1266
          %v1268 = vmul.f32 %v1219, 1.442695
          %v1269 = vpow.pop %v1268
          %v1270 = vmul.f32 %v1220, 1.442695
          %v1271 = vpow.pop %v1270
          %v1272 = vmul.f32 %v1221, 1.442695
          %v1273 = vpow.pop %v1272
          %v1274 = vmul.f32 %v1222, 1.442695
          %v1275 = vpow.pop %v1274
          %v1276 = vmul.f32 %v1223, 1.442695
          %v1277 = vpow.pop %v1276
          %v1278 = vmul.f32 %v1224, 1.442695
          %v1279 = vpow.pop %v1278
          %v1280 = vmul.f32 %v1225, 1.442695
          %v1281 = vpow.pop %v1280
          %v1282 = vmul.f32 %v1226, 1.442695
          %v1283 = vpow.pop %v1282
          %v1284 = vmul.f32 %v1227, 1.442695
          %v1285 = vpow.pop %v1284
          %v1286 = vmul.f32 %v1228, 1.442695
          %v1287 = vpow.pop %v1286
          %v1288 = vmul.f32 %v1229, 1.442695
          %v1289 = vpow.pop %v1288
          %v1290 = vsub.f32 %v1231, 1.0
          %v1291 = vsub.f32 %v1233, 1.0
          %v1292 = vsub.f32 %v1235, 1.0
          %v1293 = vsub.f32 %v1237, 1.0
          %v1294 = vsub.f32 %v1239, 1.0
          %v1295 = vsub.f32 %v1241, 1.0
          %v1296 = vsub.f32 %v1243, 1.0
          %v1297 = vsub.f32 %v1245, 1.0
          %v1298 = vsub.f32 %v1247, 1.0
          %v1299 = vsub.f32 %v1249, 1.0
          %v1300 = vsub.f32 %v1251, 1.0
          %v1301 = vsub.f32 %v1253, 1.0
          %v1302 = vsub.f32 %v1255, 1.0
          %v1303 = vsub.f32 %v1257, 1.0
          %v1304 = vsub.f32 %v1259, 1.0
          %v1305 = vsub.f32 %v1261, 1.0
          %v1306 = vsub.f32 %v1263, 1.0
          %v1307 = vsub.f32 %v1265, 1.0
          %v1308 = vsub.f32 %v1267, 1.0
          %v1309 = vsub.f32 %v1269, 1.0
          %v1310 = vsub.f32 %v1271, 1.0
          %v1311 = vsub.f32 %v1273, 1.0
          %v1312 = vsub.f32 %v1275, 1.0
          %v1313 = vsub.f32 %v1277, 1.0
          %v1314 = vsub.f32 %v1279, 1.0
          %v1315 = vsub.f32 %v1281, 1.0
          %v1316 = vsub.f32 %v1283, 1.0
          %v1317 = vsub.f32 %v1285, 1.0
          %v1318 = vsub.f32 %v1287, 1.0
          %v1319 = vsub.f32 %v1289, 1.0
          %v1320 = vsel %vm1170, %v1140, %v1290
          %v1321 = vsel %vm1171, %v1141, %v1291
          %v1322 = vsel %vm1172, %v1142, %v1292
          %v1323 = vsel %vm1173, %v1143, %v1293
          %v1324 = vsel %vm1174, %v1144, %v1294
          %v1325 = vsel %vm1175, %v1145, %v1295
          %v1326 = vsel %vm1176, %v1146, %v1296
          %v1327 = vsel %vm1177, %v1147, %v1297
          %v1328 = vsel %vm1178, %v1148, %v1298
          %v1329 = vsel %vm1179, %v1149, %v1299
          %v1330 = vsel %vm1180, %v1150, %v1300
          %v1331 = vsel %vm1181, %v1151, %v1301
          %v1332 = vsel %vm1182, %v1152, %v1302
          %v1333 = vsel %vm1183, %v1153, %v1303
          %v1334 = vsel %vm1184, %v1154, %v1304
          %v1335 = vsel %vm1185, %v1155, %v1305
          %v1336 = vsel %vm1186, %v1156, %v1306
          %v1337 = vsel %vm1187, %v1157, %v1307
          %v1338 = vsel %vm1188, %v1158, %v1308
          %v1339 = vsel %vm1189, %v1159, %v1309
          %v1340 = vsel %vm1190, %v1160, %v1310
          %v1341 = vsel %vm1191, %v1161, %v1311
          %v1342 = vsel %vm1192, %v1162, %v1312
          %v1343 = vsel %vm1193, %v1163, %v1313
          %v1344 = vsel %vm1194, %v1164, %v1314
          %v1345 = vsel %vm1195, %v1165, %v1315
          %v1346 = vsel %vm1196, %v1166, %v1316
          %v1347 = vsel %vm1197, %v1167, %v1317
          %v1348 = vsel %vm1198, %v1168, %v1318
          %v1349 = vsel %vm1199, %v1169, %v1319
          %v1350 = vmax.f32 %v1320, %v1321
          %v1351 = vmax.f32 %v1322, %v1323
          %v1352 = vmax.f32 %v1324, %v1325
          %v1353 = vmax.f32 %v1326, %v1327
          %v1354 = vmax.f32 %v1328, %v1329
          %v1355 = vmax.f32 %v1330, %v1331
          %v1356 = vmax.f32 %v1332, %v1333
          %v1357 = vmax.f32 %v1334, %v1335
          %v1358 = vmax.f32 %v1336, %v1337
          %v1359 = vmax.f32 %v1338, %v1339
          %v1360 = vmax.f32 %v1340, %v1341
          %v1361 = vmax.f32 %v1342, %v1343
          %v1362 = vmax.f32 %v1344, %v1345
          %v1363 = vmax.f32 %v1346, %v1347
          %v1364 = vmax.f32 %v1348, %v1349
          %v1365 = vpack.c.bf16 %v1350, %v1350
          %v1366 = vpack.c.bf16 %v1351, %v1351
          %v1367 = vpack.c.bf16 %v1352, %v1352
          %v1368 = vpack.c.bf16 %v1353, %v1353
          %v1369 = vpack.c.bf16 %v1354, %v1354
          %v1370 = vpack.c.bf16 %v1355, %v1355
          %v1371 = vpack.c.bf16 %v1356, %v1356
          %v1372 = vpack.c.bf16 %v1357, %v1357
          %v1373 = vpack.c.bf16 %v1358, %v1358
          %v1374 = vpack.c.bf16 %v1359, %v1359
          %v1375 = vpack.c.bf16 %v1360, %v1360
          %v1376 = vpack.c.bf16 %v1361, %v1361
          %v1377 = vpack.c.bf16 %v1362, %v1362
          %v1378 = vpack.c.bf16 %v1363, %v1363
          %v1379 = vpack.c.bf16 %v1364, %v1364
          %vm1380 = vcmask 125952
          %1381 = vst.msk [vmem:[#allocation2] sm:$0xf] %vm1380, %v1365
          %1382 = vst.msk [vmem:[#allocation2 + $0x4] sm:$0xf] %vm1380, %v1366
          %1383 = vst.msk [vmem:[#allocation2 + $0x8] sm:$0xf] %vm1380, %v1367
          %1384 = vst.msk [vmem:[#allocation2 + $0xc] sm:$0xf] %vm1380, %v1368
          %1385 = vst.msk [vmem:[#allocation2 + $0x10] sm:$0xf] %vm1380, %v1369
          %1386 = vst.msk [vmem:[#allocation2 + $0x14] sm:$0xf] %vm1380, %v1370
          %1387 = vst.msk [vmem:[#allocation2 + $0x18] sm:$0xf] %vm1380, %v1371
          %1388 = vst.msk [vmem:[#allocation2 + $0x1c] sm:$0xf] %vm1380, %v1372
          %1389 = vst.msk [vmem:[#allocation2 + $0x20] sm:$0xf] %vm1380, %v1373
          %1390 = vst.msk [vmem:[#allocation2 + $0x24] sm:$0xf] %vm1380, %v1374
          %1391 = vst.msk [vmem:[#allocation2 + $0x28] sm:$0xf] %vm1380, %v1375
          %1392 = vst.msk [vmem:[#allocation2 + $0x2c] sm:$0xf] %vm1380, %v1376
          %1393 = vst.msk [vmem:[#allocation2 + $0x30] sm:$0xf] %vm1380, %v1377
          %1394 = vst.msk [vmem:[#allocation2 + $0x34] sm:$0xf] %vm1380, %v1378
          %1395 = vst.msk [vmem:[#allocation2 + $0x38] sm:$0xf] %vm1380, %v1379
          %s1396 = scalar_lea.vmem [#allocation2], 60
          %1397 = vst.msk [vmem:[%s1396] sm:$0xf] %vm1380, 0
          %1398 = vst.msk [vmem:[#allocation3] sm:$0xff] %vm501, 0.0
        $region60: #{prediction_forward.1} parent=55 // pred_fallthru
          _
        %s1399 = smul.u32 %s28, 8
        %s1400 = smul.addr %s1399, 4
        %s1401 = scalar_lea.vmem [#allocation2], %s1400
        %v1402 = vld [vmem:[%s1401] sm:$0xf]
        %v1403 = vld [vmem:[%s1401 + $0x4] sm:$0xf]
        %v1404 = vld [vmem:[%s1401 + $0x8] sm:$0xf]
        %v1405 = vld [vmem:[%s1401 + $0xc] sm:$0xf]
        %v1406 = vld [vmem:[%s1401 + $0x10] sm:$0xf]
        %v1407 = vld [vmem:[%s1401 + $0x14] sm:$0xf]
        %v1408 = vld [vmem:[%s1401 + $0x18] sm:$0xf]
        %v1409 = vld [vmem:[%s1401 + $0x1c] sm:$0xf]
        %v1410 = vld [vmem:[%s366] sm:$0xf]
        %v1411 = vld [vmem:[%s366 + $0x4] sm:$0xf]
        %v1412 = vld [vmem:[%s366 + $0x8] sm:$0xf]
        %v1413 = vld [vmem:[%s366 + $0xc] sm:$0xf]
        %v1414 = vld [vmem:[%s366 + $0x10] sm:$0xf]
        %v1415 = vld [vmem:[%s366 + $0x14] sm:$0xf]
        %v1416 = vld [vmem:[%s366 + $0x18] sm:$0xf]
        %v1417 = vld [vmem:[%s366 + $0x1c] sm:$0xf]
        %v1418 = vld [vmem:[%s366 + $0x20] sm:$0xf]
        %v1419 = vld [vmem:[%s366 + $0x24] sm:$0xf]
        %v1420 = vld [vmem:[%s366 + $0x28] sm:$0xf]
        %v1421 = vld [vmem:[%s366 + $0x2c] sm:$0xf]
        %v1422 = vld [vmem:[%s366 + $0x30] sm:$0xf]
        %v1423 = vld [vmem:[%s366 + $0x34] sm:$0xf]
        %v1424 = vld [vmem:[%s366 + $0x38] sm:$0xf]
        %v1425 = vld [vmem:[%s366 + $0x3c] sm:$0xf]
        %v1428 = vunpack.c.l.b16 %v1410
        %v1429 = vunpack.c.l.b16 %v1411
        %v1430 = vpack.c.b16 %v1429, %v1428
        %vm1432 = vcmask 130048
        %v1434 = vsel %vm1432, %v1402, 0
        %1436 = vmatprep.subr.bf16.mxu0 0
        %1437 = vmatpush1.bf16.msra.mxu0 %v1430
        %1438 = vmatprep.subr.bf16.mxu0 0
        %1439 = vmatpush1.bf16.msra.mxu0 0
        %1440 = vmatprep.subr.bf16.mxu0 0
        %1441 = vmatpush1.bf16.msra.mxu0 0
        %1442 = vmatprep.subr.bf16.mxu0 0
        %1443 = vmatpush1.bf16.msra.mxu0 0
        %1444 = vmatprep.subr.bf16.mxu0 0
        %1445 = vmatpush1.bf16.msra.mxu0 0
        %1446 = vmatprep.subr.bf16.mxu0 0
        %1447 = vmatpush1.bf16.msra.mxu0 0
        %1448 = vmatprep.subr.bf16.mxu0 0
        %1449 = vmatpush1.bf16.msra.mxu0 0
        %1450 = vmatprep.subr.bf16.mxu0 0
        %1451 = vmatpush1.bf16.msra.mxu0 0
        %1452 = vmatprep.subr.bf16.mxu0 0
        %1453 = vmatpush1.bf16.msra.mxu0 0
        %1454 = vmatprep.subr.bf16.mxu0 0
        %1455 = vmatpush1.bf16.msra.mxu0 0
        %1456 = vmatprep.subr.bf16.mxu0 0
        %1457 = vmatpush1.bf16.msra.mxu0 0
        %1458 = vmatprep.subr.bf16.mxu0 0
        %1459 = vmatpush1.bf16.msra.mxu0 0
        %1460 = vmatprep.subr.bf16.mxu0 0
        %1461 = vmatpush1.bf16.msra.mxu0 0
        %1462 = vmatprep.subr.bf16.mxu0 0
        %1463 = vmatpush1.bf16.msra.mxu0 0
        %1464 = vmatprep.subr.bf16.mxu0 0
        %1465 = vmatpush1.bf16.msra.mxu0 0
        %1466 = vmatprep.subr.bf16.mxu0 0
        %1467 = vmatpush1.bf16.msra.mxu0 0
        %1468 = vmatprep.mubr.bf16.mxu0 0
        %1469 = vmatmul.mubr.bf16.gmra.mrb[0].mxu0 %v1434
        %v1470 = vpop.f32.mrb[0].mxu0
        %v1471 = vadd.f32 0.0, %v1470
        %v1472 = vpop.f32.mrb[0].mxu0
        %v1473 = vpop.f32.mrb[0].mxu0
        %v1474 = vpop.f32.mrb[0].mxu0
        %1475 = vdwg.mxu0
        %v1478 = vunpack.c.l.b16 %v1412
        %v1479 = vunpack.c.l.b16 %v1413
        %v1480 = vpack.c.b16 %v1479, %v1478
        %v1483 = vsel %vm1432, %v1403, 0
        %1485 = vmatprep.subr.bf16.mxu0 0
        %1486 = vmatpush1.bf16.msra.mxu0 %v1480
        %1487 = vmatprep.subr.bf16.mxu0 0
        %1488 = vmatpush1.bf16.msra.mxu0 0
        %1489 = vmatprep.subr.bf16.mxu0 0
        %1490 = vmatpush1.bf16.msra.mxu0 0
        %1491 = vmatprep.subr.bf16.mxu0 0
        %1492 = vmatpush1.bf16.msra.mxu0 0
        %1493 = vmatprep.subr.bf16.mxu0 0
        %1494 = vmatpush1.bf16.msra.mxu0 0
        %1495 = vmatprep.subr.bf16.mxu0 0
        %1496 = vmatpush1.bf16.msra.mxu0 0
        %1497 = vmatprep.subr.bf16.mxu0 0
        %1498 = vmatpush1.bf16.msra.mxu0 0
        %1499 = vmatprep.subr.bf16.mxu0 0
        %1500 = vmatpush1.bf16.msra.mxu0 0
        %1501 = vmatprep.subr.bf16.mxu0 0
        %1502 = vmatpush1.bf16.msra.mxu0 0
        %1503 = vmatprep.subr.bf16.mxu0 0
        %1504 = vmatpush1.bf16.msra.mxu0 0
        %1505 = vmatprep.subr.bf16.mxu0 0
        %1506 = vmatpush1.bf16.msra.mxu0 0
        %1507 = vmatprep.subr.bf16.mxu0 0
        %1508 = vmatpush1.bf16.msra.mxu0 0
        %1509 = vmatprep.subr.bf16.mxu0 0
        %1510 = vmatpush1.bf16.msra.mxu0 0
        %1511 = vmatprep.subr.bf16.mxu0 0
        %1512 = vmatpush1.bf16.msra.mxu0 0
        %1513 = vmatprep.subr.bf16.mxu0 0
        %1514 = vmatpush1.bf16.msra.mxu0 0
        %1515 = vmatprep.subr.bf16.mxu0 0
        %1516 = vmatpush1.bf16.msra.mxu0 0
        %1517 = vmatprep.mubr.bf16.mxu0 0
        %1518 = vmatmul.mubr.bf16.gmra.mrb[0].mxu0 %v1483
        %v1519 = vpop.f32.mrb[0].mxu0
        %v1520 = vadd.f32 0.0, %v1519
        %v1521 = vpop.f32.mrb[0].mxu0
        %v1522 = vpop.f32.mrb[0].mxu0
        %v1523 = vpop.f32.mrb[0].mxu0
        %1524 = vdwg.mxu0
        %v1527 = vunpack.c.l.b16 %v1414
        %v1528 = vunpack.c.l.b16 %v1415
        %v1529 = vpack.c.b16 %v1528, %v1527
        %v1532 = vsel %vm1432, %v1404, 0
        %1534 = vmatprep.subr.bf16.mxu0 0
        %1535 = vmatpush1.bf16.msra.mxu0 %v1529
        %1536 = vmatprep.subr.bf16.mxu0 0
        %1537 = vmatpush1.bf16.msra.mxu0 0
        %1538 = vmatprep.subr.bf16.mxu0 0
        %1539 = vmatpush1.bf16.msra.mxu0 0
        %1540 = vmatprep.subr.bf16.mxu0 0
        %1541 = vmatpush1.bf16.msra.mxu0 0
        %1542 = vmatprep.subr.bf16.mxu0 0
        %1543 = vmatpush1.bf16.msra.mxu0 0
        %1544 = vmatprep.subr.bf16.mxu0 0
        %1545 = vmatpush1.bf16.msra.mxu0 0
        %1546 = vmatprep.subr.bf16.mxu0 0
        %1547 = vmatpush1.bf16.msra.mxu0 0
        %1548 = vmatprep.subr.bf16.mxu0 0
        %1549 = vmatpush1.bf16.msra.mxu0 0
        %1550 = vmatprep.subr.bf16.mxu0 0
        %1551 = vmatpush1.bf16.msra.mxu0 0
        %1552 = vmatprep.subr.bf16.mxu0 0
        %1553 = vmatpush1.bf16.msra.mxu0 0
        %1554 = vmatprep.subr.bf16.mxu0 0
        %1555 = vmatpush1.bf16.msra.mxu0 0
        %1556 = vmatprep.subr.bf16.mxu0 0
        %1557 = vmatpush1.bf16.msra.mxu0 0
        %1558 = vmatprep.subr.bf16.mxu0 0
        %1559 = vmatpush1.bf16.msra.mxu0 0
        %1560 = vmatprep.subr.bf16.mxu0 0
        %1561 = vmatpush1.bf16.msra.mxu0 0
        %1562 = vmatprep.subr.bf16.mxu0 0
        %1563 = vmatpush1.bf16.msra.mxu0 0
        %1564 = vmatprep.subr.bf16.mxu0 0
        %1565 = vmatpush1.bf16.msra.mxu0 0
        %1566 = vmatprep.mubr.bf16.mxu0 0
        %1567 = vmatmul.mubr.bf16.gmra.mrb[0].mxu0 %v1532
        %v1568 = vpop.f32.mrb[0].mxu0
        %v1569 = vadd.f32 0.0, %v1568
        %v1570 = vpop.f32.mrb[0].mxu0
        %v1571 = vpop.f32.mrb[0].mxu0
        %v1572 = vpop.f32.mrb[0].mxu0
        %1573 = vdwg.mxu0
        %v1576 = vunpack.c.l.b16 %v1416
        %v1577 = vunpack.c.l.b16 %v1417
        %v1578 = vpack.c.b16 %v1577, %v1576
        %v1581 = vsel %vm1432, %v1405, 0
        %1583 = vmatprep.subr.bf16.mxu0 0
        %1584 = vmatpush1.bf16.msra.mxu0 %v1578
        %1585 = vmatprep.subr.bf16.mxu0 0
        %1586 = vmatpush1.bf16.msra.mxu0 0
        %1587 = vmatprep.subr.bf16.mxu0 0
        %1588 = vmatpush1.bf16.msra.mxu0 0
        %1589 = vmatprep.subr.bf16.mxu0 0
        %1590 = vmatpush1.bf16.msra.mxu0 0
        %1591 = vmatprep.subr.bf16.mxu0 0
        %1592 = vmatpush1.bf16.msra.mxu0 0
        %1593 = vmatprep.subr.bf16.mxu0 0
        %1594 = vmatpush1.bf16.msra.mxu0 0
        %1595 = vmatprep.subr.bf16.mxu0 0
        %1596 = vmatpush1.bf16.msra.mxu0 0
        %1597 = vmatprep.subr.bf16.mxu0 0
        %1598 = vmatpush1.bf16.msra.mxu0 0
        %1599 = vmatprep.subr.bf16.mxu0 0
        %1600 = vmatpush1.bf16.msra.mxu0 0
        %1601 = vmatprep.subr.bf16.mxu0 0
        %1602 = vmatpush1.bf16.msra.mxu0 0
        %1603 = vmatprep.subr.bf16.mxu0 0
        %1604 = vmatpush1.bf16.msra.mxu0 0
        %1605 = vmatprep.subr.bf16.mxu0 0
        %1606 = vmatpush1.bf16.msra.mxu0 0
        %1607 = vmatprep.subr.bf16.mxu0 0
        %1608 = vmatpush1.bf16.msra.mxu0 0
        %1609 = vmatprep.subr.bf16.mxu0 0
        %1610 = vmatpush1.bf16.msra.mxu0 0
        %1611 = vmatprep.subr.bf16.mxu0 0
        %1612 = vmatpush1.bf16.msra.mxu0 0
        %1613 = vmatprep.subr.bf16.mxu0 0
        %1614 = vmatpush1.bf16.msra.mxu0 0
        %1615 = vmatprep.mubr.bf16.mxu0 0
        %1616 = vmatmul.mubr.bf16.gmra.mrb[0].mxu0 %v1581
        %v1617 = vpop.f32.mrb[0].mxu0
        %v1618 = vadd.f32 0.0, %v1617
        %v1619 = vpop.f32.mrb[0].mxu0
        %v1620 = vpop.f32.mrb[0].mxu0
        %v1621 = vpop.f32.mrb[0].mxu0
        %1622 = vdwg.mxu0
        %v1625 = vunpack.c.l.b16 %v1418
        %v1626 = vunpack.c.l.b16 %v1419
        %v1627 = vpack.c.b16 %v1626, %v1625
        %v1630 = vsel %vm1432, %v1406, 0
        %1632 = vmatprep.subr.bf16.mxu0 0
        %1633 = vmatpush1.bf16.msra.mxu0 %v1627
        %1634 = vmatprep.subr.bf16.mxu0 0
        %1635 = vmatpush1.bf16.msra.mxu0 0
        %1636 = vmatprep.subr.bf16.mxu0 0
        %1637 = vmatpush1.bf16.msra.mxu0 0
        %1638 = vmatprep.subr.bf16.mxu0 0
        %1639 = vmatpush1.bf16.msra.mxu0 0
        %1640 = vmatprep.subr.bf16.mxu0 0
        %1641 = vmatpush1.bf16.msra.mxu0 0
        %1642 = vmatprep.subr.bf16.mxu0 0
        %1643 = vmatpush1.bf16.msra.mxu0 0
        %1644 = vmatprep.subr.bf16.mxu0 0
        %1645 = vmatpush1.bf16.msra.mxu0 0
        %1646 = vmatprep.subr.bf16.mxu0 0
        %1647 = vmatpush1.bf16.msra.mxu0 0
        %1648 = vmatprep.subr.bf16.mxu0 0
        %1649 = vmatpush1.bf16.msra.mxu0 0
        %1650 = vmatprep.subr.bf16.mxu0 0
        %1651 = vmatpush1.bf16.msra.mxu0 0
        %1652 = vmatprep.subr.bf16.mxu0 0
        %1653 = vmatpush1.bf16.msra.mxu0 0
        %1654 = vmatprep.subr.bf16.mxu0 0
        %1655 = vmatpush1.bf16.msra.mxu0 0
        %1656 = vmatprep.subr.bf16.mxu0 0
        %1657 = vmatpush1.bf16.msra.mxu0 0
        %1658 = vmatprep.subr.bf16.mxu0 0
        %1659 = vmatpush1.bf16.msra.mxu0 0
        %1660 = vmatprep.subr.bf16.mxu0 0
        %1661 = vmatpush1.bf16.msra.mxu0 0
        %1662 = vmatprep.subr.bf16.mxu0 0
        %1663 = vmatpush1.bf16.msra.mxu0 0
        %1664 = vmatprep.mubr.bf16.mxu0 0
        %1665 = vmatmul.mubr.bf16.gmra.mrb[0].mxu0 %v1630
        %v1666 = vpop.f32.mrb[0].mxu0
        %v1667 = vadd.f32 0.0, %v1666
        %v1668 = vpop.f32.mrb[0].mxu0
        %v1669 = vpop.f32.mrb[0].mxu0
        %v1670 = vpop.f32.mrb[0].mxu0
        %1671 = vdwg.mxu0
        %v1674 = vunpack.c.l.b16 %v1420
        %v1675 = vunpack.c.l.b16 %v1421
        %v1676 = vpack.c.b16 %v1675, %v1674
        %v1679 = vsel %vm1432, %v1407, 0
        %1681 = vmatprep.subr.bf16.mxu0 0
        %1682 = vmatpush1.bf16.msra.mxu0 %v1676
        %1683 = vmatprep.subr.bf16.mxu0 0
        %1684 = vmatpush1.bf16.msra.mxu0 0
        %1685 = vmatprep.subr.bf16.mxu0 0
        %1686 = vmatpush1.bf16.msra.mxu0 0
        %1687 = vmatprep.subr.bf16.mxu0 0
        %1688 = vmatpush1.bf16.msra.mxu0 0
        %1689 = vmatprep.subr.bf16.mxu0 0
        %1690 = vmatpush1.bf16.msra.mxu0 0
        %1691 = vmatprep.subr.bf16.mxu0 0
        %1692 = vmatpush1.bf16.msra.mxu0 0
        %1693 = vmatprep.subr.bf16.mxu0 0
        %1694 = vmatpush1.bf16.msra.mxu0 0
        %1695 = vmatprep.subr.bf16.mxu0 0
        %1696 = vmatpush1.bf16.msra.mxu0 0
        %1697 = vmatprep.subr.bf16.mxu0 0
        %1698 = vmatpush1.bf16.msra.mxu0 0
        %1699 = vmatprep.subr.bf16.mxu0 0
        %1700 = vmatpush1.bf16.msra.mxu0 0
        %1701 = vmatprep.subr.bf16.mxu0 0
        %1702 = vmatpush1.bf16.msra.mxu0 0
        %1703 = vmatprep.subr.bf16.mxu0 0
        %1704 = vmatpush1.bf16.msra.mxu0 0
        %1705 = vmatprep.subr.bf16.mxu0 0
        %1706 = vmatpush1.bf16.msra.mxu0 0
        %1707 = vmatprep.subr.bf16.mxu0 0
        %1708 = vmatpush1.bf16.msra.mxu0 0
        %1709 = vmatprep.subr.bf16.mxu0 0
        %1710 = vmatpush1.bf16.msra.mxu0 0
        %1711 = vmatprep.subr.bf16.mxu0 0
        %1712 = vmatpush1.bf16.msra.mxu0 0
        %1713 = vmatprep.mubr.bf16.mxu0 0
        %1714 = vmatmul.mubr.bf16.gmra.mrb[0].mxu0 %v1679
        %v1715 = vpop.f32.mrb[0].mxu0
        %v1716 = vadd.f32 0.0, %v1715
        %v1717 = vpop.f32.mrb[0].mxu0
        %v1718 = vpop.f32.mrb[0].mxu0
        %v1719 = vpop.f32.mrb[0].mxu0
        %1720 = vdwg.mxu0
        %v1723 = vunpack.c.l.b16 %v1422
        %v1724 = vunpack.c.l.b16 %v1423
        %v1725 = vpack.c.b16 %v1724, %v1723
        %v1728 = vsel %vm1432, %v1408, 0
        %1730 = vmatprep.subr.bf16.mxu0 0
        %1731 = vmatpush1.bf16.msra.mxu0 %v1725
        %1732 = vmatprep.subr.bf16.mxu0 0
        %1733 = vmatpush1.bf16.msra.mxu0 0
        %1734 = vmatprep.subr.bf16.mxu0 0
        %1735 = vmatpush1.bf16.msra.mxu0 0
        %1736 = vmatprep.subr.bf16.mxu0 0
        %1737 = vmatpush1.bf16.msra.mxu0 0
        %1738 = vmatprep.subr.bf16.mxu0 0
        %1739 = vmatpush1.bf16.msra.mxu0 0
        %1740 = vmatprep.subr.bf16.mxu0 0
        %1741 = vmatpush1.bf16.msra.mxu0 0
        %1742 = vmatprep.subr.bf16.mxu0 0
        %1743 = vmatpush1.bf16.msra.mxu0 0
        %1744 = vmatprep.subr.bf16.mxu0 0
        %1745 = vmatpush1.bf16.msra.mxu0 0
        %1746 = vmatprep.subr.bf16.mxu0 0
        %1747 = vmatpush1.bf16.msra.mxu0 0
        %1748 = vmatprep.subr.bf16.mxu0 0
        %1749 = vmatpush1.bf16.msra.mxu0 0
        %1750 = vmatprep.subr.bf16.mxu0 0
        %1751 = vmatpush1.bf16.msra.mxu0 0
        %1752 = vmatprep.subr.bf16.mxu0 0
        %1753 = vmatpush1.bf16.msra.mxu0 0
        %1754 = vmatprep.subr.bf16.mxu0 0
        %1755 = vmatpush1.bf16.msra.mxu0 0
        %1756 = vmatprep.subr.bf16.mxu0 0
        %1757 = vmatpush1.bf16.msra.mxu0 0
        %1758 = vmatprep.subr.bf16.mxu0 0
        %1759 = vmatpush1.bf16.msra.mxu0 0
        %1760 = vmatprep.subr.bf16.mxu0 0
        %1761 = vmatpush1.bf16.msra.mxu0 0
        %1762 = vmatprep.mubr.bf16.mxu0 0
        %1763 = vmatmul.mubr.bf16.gmra.mrb[0].mxu0 %v1728
        %v1764 = vpop.f32.mrb[0].mxu0
        %v1765 = vadd.f32 0.0, %v1764
        %v1766 = vpop.f32.mrb[0].mxu0
        %v1767 = vpop.f32.mrb[0].mxu0
        %v1768 = vpop.f32.mrb[0].mxu0
        %1769 = vdwg.mxu0
        %v1772 = vunpack.c.l.b16 %v1424
        %v1773 = vunpack.c.l.b16 %v1425
        %v1774 = vpack.c.b16 %v1773, %v1772
        %v1777 = vsel %vm1432, %v1409, 0
        %1779 = vmatprep.subr.bf16.mxu0 0
        %1780 = vmatpush1.bf16.msra.mxu0 %v1774
        %1781 = vmatprep.subr.bf16.mxu0 0
        %1782 = vmatpush1.bf16.msra.mxu0 0
        %1783 = vmatprep.subr.bf16.mxu0 0
        %1784 = vmatpush1.bf16.msra.mxu0 0
        %1785 = vmatprep.subr.bf16.mxu0 0
        %1786 = vmatpush1.bf16.msra.mxu0 0
        %1787 = vmatprep.subr.bf16.mxu0 0
        %1788 = vmatpush1.bf16.msra.mxu0 0
        %1789 = vmatprep.subr.bf16.mxu0 0
        %1790 = vmatpush1.bf16.msra.mxu0 0
        %1791 = vmatprep.subr.bf16.mxu0 0
        %1792 = vmatpush1.bf16.msra.mxu0 0
        %1793 = vmatprep.subr.bf16.mxu0 0
        %1794 = vmatpush1.bf16.msra.mxu0 0
        %1795 = vmatprep.subr.bf16.mxu0 0
        %1796 = vmatpush1.bf16.msra.mxu0 0
        %1797 = vmatprep.subr.bf16.mxu0 0
        %1798 = vmatpush1.bf16.msra.mxu0 0
        %1799 = vmatprep.subr.bf16.mxu0 0
        %1800 = vmatpush1.bf16.msra.mxu0 0
        %1801 = vmatprep.subr.bf16.mxu0 0
        %1802 = vmatpush1.bf16.msra.mxu0 0
        %1803 = vmatprep.subr.bf16.mxu0 0
        %1804 = vmatpush1.bf16.msra.mxu0 0
        %1805 = vmatprep.subr.bf16.mxu0 0
        %1806 = vmatpush1.bf16.msra.mxu0 0
        %1807 = vmatprep.subr.bf16.mxu0 0
        %1808 = vmatpush1.bf16.msra.mxu0 0
        %1809 = vmatprep.subr.bf16.mxu0 0
        %1810 = vmatpush1.bf16.msra.mxu0 0
        %1811 = vmatprep.mubr.bf16.mxu0 0
        %1812 = vmatmul.mubr.bf16.gmra.mrb[0].mxu0 %v1777
        %v1813 = vpop.f32.mrb[0].mxu0
        %v1814 = vadd.f32 0.0, %v1813
        %v1815 = vpop.f32.mrb[0].mxu0
        %v1816 = vpop.f32.mrb[0].mxu0
        %v1817 = vpop.f32.mrb[0].mxu0
        %1818 = vdwg.mxu0
        %v1819 = vld [vmem:[#allocation3] sm:$0xff]
        %vm1820 = vcmask 261120
        %v1821 = vsel %vm1820, %v1471, 0.0
        %v1822 = vsel %vm1820, %v1520, 0.0
        %v1823 = vadd.f32 %v1821, %v1822
        %v1824 = vsel %vm1820, %v1569, 0.0
        %v1825 = vadd.f32 %v1823, %v1824
        %v1826 = vsel %vm1820, %v1618, 0.0
        %v1827 = vadd.f32 %v1825, %v1826
        %v1828 = vsel %vm1820, %v1667, 0.0
        %v1829 = vadd.f32 %v1827, %v1828
        %v1830 = vsel %vm1820, %v1716, 0.0
        %v1831 = vadd.f32 %v1829, %v1830
        %v1832 = vsel %vm1820, %v1765, 0.0
        %v1833 = vadd.f32 %v1831, %v1832
        %v1834 = vsel %vm1820, %v1814, 0.0
        %v1835 = vadd.f32 %v1833, %v1834
        %v1836 = vadd.f32 %v1819, %v1835
        %1837 = vst.msk [vmem:[#allocation3] sm:$0xff] %vm1820, %v1836
        %p1838 = scmp.eq.s32.totalorder %s28, 1
        // Predicated region
        $region61: #{prediction_forward.1} parent=55 // pred_check
          %p1839 = pneg %p1838
        $region62: #{prediction_forward.1} parent=55 // pred_check_branch
          %1841 = sbr.rel (%p1839) target = $region64
        $region63: #{prediction_forward.1} parent=55 // pred_region
          %v1842 = vld [vmem:[#allocation3] sm:$0xff]
          %v1843 = vld [vmem:[%s4] sm:$0x1]
          %v1845 = vlaneseq
          %v1846 = vshrl.u32 %v1845, 7
          %v1847 = vsub.s32 0, %v1846
          %v1848 = vrot.slane %v1843, %v1847
          %v1850 = vadd.f32 %v1842, %v1848
          %v1851 = vsel %vm1820, %v1850, 0.0
          %1852 = vadd.xlane.f32.xlu0 %v1851
          %v1853 = vpop.xlane.xlu0 %1852
          %v1854 = vrcp.pop 32.0
          %v1855 = vmul.f32 %v1853, %v1854
          %v1856 = vsub.f32 %v1850, %v1855
          %v1857 = vmul.f32 %v1856, %v1856
          %v1858 = vsel %vm1820, %v1857, 0.0
          %1859 = vadd.xlane.f32.xlu0 %v1858
          %v1860 = vpop.xlane.xlu0 %1859
          %v1861 = vmul.f32 %v1860, %v1854
          %v1862 = vadd.f32 %v1861, 1e-05
          %v1863 = vrsqrt.pop %v1862
          %v1864 = vmul.f32 %v1856, %v1863
          %v1865 = vld [vmem:[%s5] sm:$0x1]
          %v1867 = vlaneseq
          %v1868 = vshrl.u32 %v1867, 7
          %v1869 = vsub.s32 0, %v1868
          %v1870 = vrot.slane %v1865, %v1869
          %v1872 = vmul.f32 %v1864, %v1870
          %v1873 = vld [vmem:[%s6] sm:$0x1]
          %v1875 = vlaneseq
          %v1876 = vshrl.u32 %v1875, 7
          %v1877 = vsub.s32 0, %v1876
          %v1878 = vrot.slane %v1873, %v1877
          %v1880 = vadd.f32 %v1872, %v1878
          %vm1881 = vcmp.gt.f32.partialorder %v1880, 0.0
          %v1882 = vmin.f32 %v1880, 0.0
          %v1883 = vmul.f32 %v1882, 1.442695
          %v1884 = vpow.pop %v1883
          %v1885 = vsub.f32 %v1884, 1.0
          %v1886 = vsel %vm1881, %v1880, %v1885
          %v1887 = vpack.c.bf16 %v1886, %v1886
          %v1888 = vld [vmem:[%s7] sm:$0xff]
          %v1889 = vld [vmem:[%s7 + $0x8] sm:$0xff]
          %v1890 = vld [vmem:[%s7 + $0x10] sm:$0xff]
          %v1891 = vld [vmem:[%s7 + $0x18] sm:$0xff]
          %v1892 = vld [vmem:[%s8] sm:$0x3]
          %v1894 = vlaneseq
          %v1895 = vshrl.u32 %v1894, 7
          %v1896 = vsub.s32 0, %v1895
          %v1897 = vrot.slane %v1892, %v1896
          %v1898 = vlaneseq
          %v1899 = vshrl.u32 %v1898, 7
          %v1900 = vsub.s32 1, %v1899
          %v1901 = vrot.slane %v1892, %v1900
          %v1908 = vunpack.c.l.b16 %v1888
          %v1909 = vunpack.c.h.b16 %v1888
          %v1910 = vunpack.c.l.b16 %v1889
          %v1911 = vunpack.c.h.b16 %v1889
          %v1912 = vunpack.c.l.b16 %v1890
          %v1913 = vunpack.c.h.b16 %v1890
          %v1914 = vunpack.c.l.b16 %v1891
          %v1915 = vunpack.c.h.b16 %v1891
          %v1916 = vpack.c.b16 %v1910, %v1908
          %v1917 = vpack.c.b16 %v1911, %v1909
          %v1918 = vpack.c.b16 %v1914, %v1912
          %v1919 = vpack.c.b16 %v1915, %v1913
          %v1925 = vsel %vm1820, %v1887, 0
          %1927 = vmatprep.subr.bf16.mxu0 %v1917
          %1928 = vmatpush1.bf16.msra.mxu0 %v1916
          %1929 = vmatprep.subr.bf16.mxu0 %v1919
          %1930 = vmatpush1.bf16.msra.mxu0 %v1918
          %1931 = vmatprep.subr.bf16.mxu0 0
          %1932 = vmatpush1.bf16.msra.mxu0 0
          %1933 = vmatprep.subr.bf16.mxu0 0
          %1934 = vmatpush1.bf16.msra.mxu0 0
          %1935 = vmatprep.subr.bf16.mxu0 0
          %1936 = vmatpush1.bf16.msra.mxu0 0
          %1937 = vmatprep.subr.bf16.mxu0 0
          %1938 = vmatpush1.bf16.msra.mxu0 0
          %1939 = vmatprep.subr.bf16.mxu0 0
          %1940 = vmatpush1.bf16.msra.mxu0 0
          %1941 = vmatprep.subr.bf16.mxu0 0
          %1942 = vmatpush1.bf16.msra.mxu0 0
          %1943 = vmatprep.subr.bf16.mxu0 0
          %1944 = vmatpush1.bf16.msra.mxu0 0
          %1945 = vmatprep.subr.bf16.mxu0 0
          %1946 = vmatpush1.bf16.msra.mxu0 0
          %1947 = vmatprep.subr.bf16.mxu0 0
          %1948 = vmatpush1.bf16.msra.mxu0 0
          %1949 = vmatprep.subr.bf16.mxu0 0
          %1950 = vmatpush1.bf16.msra.mxu0 0
          %1951 = vmatprep.subr.bf16.mxu0 0
          %1952 = vmatpush1.bf16.msra.mxu0 0
          %1953 = vmatprep.subr.bf16.mxu0 0
          %1954 = vmatpush1.bf16.msra.mxu0 0
          %1955 = vmatprep.subr.bf16.mxu0 0
          %1956 = vmatpush1.bf16.msra.mxu0 0
          %1957 = vmatprep.subr.bf16.mxu0 0
          %1958 = vmatpush1.bf16.msra.mxu0 0
          %1959 = vmatprep.mubr.bf16.mxu0 0
          %1960 = vmatmul.mubr.bf16.gmra.mrb[0].mxu0 %v1925
          %v1961 = vpop.f32.mrb[0].mxu0
          %v1962 = vadd.f32 %v1897, %v1961
          %v1963 = vpop.f32.mrb[0].mxu0
          %v1964 = vadd.f32 %v1901, %v1963
          %v1965 = vpop.f32.mrb[0].mxu0
          %v1966 = vpop.f32.mrb[0].mxu0
          %1967 = vdwg.mxu0
          %v1968 = vsub.f32 0.0, %v1962
          %v1969 = vsub.f32 0.0, %v1964
          %v1970 = vmul.f32 %v1968, 1.442695
          %v1971 = vpow.pop %v1970
          %v1972 = vmul.f32 %v1969, 1.442695
          %v1973 = vpow.pop %v1972
          %v1974 = vadd.f32 %v1971, 1.0
          %v1975 = vadd.f32 %v1973, 1.0
          %v1976 = vrcp.pop %v1974
          %v1977 = vrcp.pop %v1975
          %1978 = vst [vmem:[%s355] sm:$0xff] %v1976
          %1979 = vst [vmem:[%s355 + $0x8] sm:$0xff] %v1977
        $region64: #{prediction_forward.1} parent=55 // pred_fallthru
          _
        %s1980 = sand.u32 %s242, 1
        %s1981 = scalar_lea.sflag [#allocation5], %s1980
        %s1982 = sand.u32 %s242, 1
        %s1983 = smul.addr %s1982, 16
        %s1984 = scalar_lea.vmem [#allocation4], %s1983
        // Predicated region
        $region65: #{prediction_forward.1} parent=55 // pred_check
          %p1985 = pneg %p252
        $region66: #{prediction_forward.1} parent=55 // pred_check_branch
          %1987 = sbr.rel (%p1985) target = $region68
        $region67: #{prediction_forward.1} parent=55 // pred_region
          %s1989 = ssub.s32 256, 256
          %1990 = vsyncadd %s1981, %s1989
          %s1991 = smul.addr %s27, 2
          %s1992 = smul.addr %s1991, 128
          %s1993 = scalar_lea.hbm %s9, %s1992
          %s1995 = sshll.u32 %s1984, 4
          %s1996 = int_to_ptr.vmem [resolvable:$true] %s1995
          %1998 = dma.vmem_to_hbm [thread:$0]  %s1996, 256, %s1993, %s1981
        $region68: #{prediction_forward.1} parent=55 // pred_fallthru
          _
      $region56: #{prediction_forward.1} parent=5 // pred_fallthru
        _
      %p1999 = scmp.le.s32.totalorder 2, %s18
      // Predicated region
      $region69: #{prediction_forward.1} parent=5 // pred_check
        %p2000 = pneg %p1999
      $region70: #{prediction_forward.1} parent=5 // pred_check_branch
        %2002 = sbr.rel (%p2000) target = $region72
      $region71: #{prediction_forward.1} parent=5 // pred_region
        %s2003 = ssub.s32 %s18, 2
        // Predicated region
        $region73: #{prediction_forward.1} parent=71 // pred_check
          %p2004 = pneg %p258
        $region74: #{prediction_forward.1} parent=71 // pred_check_branch
          %2006 = sbr.rel (%p2004) target = $region76
        $region75: #{prediction_forward.1} parent=71 // pred_region
          %s2007 = sand.u32 %s243, 1
          %s2008 = scalar_lea.sflag [#allocation5], %s2007
          %s2009 = sand.u32 %s243, 1
          %s2010 = smul.addr %s2009, 16
          %s2011 = scalar_lea.vmem [#allocation4], %s2010
          %2012 = dma.done %s2008, 256
        $region76: #{prediction_forward.1} parent=71 // pred_fallthru
          _
      $region72: #{prediction_forward.1} parent=5 // pred_fallthru
        _
    $region6: #{prediction_forward.1} parent=1 // loop_footer
      %s22 = sadd.s32 1, %s18
    $region7: #{prediction_forward.1} parent=1 // loop_footer_branch
      %17 = sbr.rel target = $region3
    $region8: #{prediction_forward.1} parent=1 // loop_exit
      _
    %2013 = vsyncpa [#allocation5], 1
    %s2014 = scalar_lea.sflag [#allocation5], 1
    %2015 = vsyncpa %s2014, 1

</llo_original>
